<compile_context>
chip_gen: v7x
topology: tpu7x:2x2x1
jax: 0.10.0
libtpu: 0.0.40
codegen_flags: <defaults>
</compile_context>

<pallas_src>
import functools

import jax
import jax.numpy as jnp
from jax.experimental import pallas as pl
from jax.experimental.pallas import tpu as pltpu


def _conv_bn_relu_kernel(x_ref, w_ref, shift_ref, o_ref, *,
                         kernel_size, dilation, tile_h, out_w, m_pad):
    """One (batch, H-row-tile) output block of fused conv + BN-shift + ReLU.

    x_ref:     (1, Hp, Wp, Cin)       bf16 zero-padded input (NHWC), resident
                                      across the h grid axis (constant index_map)
    w_ref:     (K*K*Cin, Cout_pad)    bf16 im2col-ordered weights, BN scale folded
    shift_ref: (1, Cout_pad)          f32  beta - mean * scale
    o_ref:     (1, 1, M_pad, Cout_pad) bf16 lane-dense output slab
    """
    K = kernel_size
    TH = tile_h
    W = out_w
    Cin = x_ref.shape[3]
    M = TH * W
    h0 = pl.program_id(1) * TH

    # Build the (M, K*K*Cin) im2col slab once per tile: one dynamic slice per kh
    # on the cheap major H axis, static kw slices inside.  Folding the K*K taps
    # into the contraction dim turns the whole tile into a single deep MXU matmul
    # and removes all per-tap accumulator traffic.
    cols = []
    for kh in range(K):
        slab = x_ref[0, pl.ds(h0 + kh * dilation, TH), :, :]         # (TH, Wp, Cin)
        for kw in range(K):
            patch = slab[:, kw * dilation:kw * dilation + W, :]      # (TH, W, Cin)
            cols.append(patch.reshape(M, Cin))
    im2col = jnp.concatenate(cols, axis=-1)                          # (M, K*K*Cin)

    # Single bf16 MXU matmul with f32 accumulation; result stays in registers.
    acc = jnp.dot(im2col, w_ref[...], preferred_element_type=jnp.float32)

    # Folded BatchNorm shift + ReLU.
    y = jnp.maximum(acc + shift_ref[...], 0.0)
    if m_pad != M:
        y = jnp.pad(y, ((0, m_pad - M), (0, 0)))
    # Unmasked lane/sublane-dense bf16 store (M_pad % 16 == 0, Cout_pad % 128 == 0).
    o_ref[0, 0] = y.astype(o_ref.dtype)


def _vmem_limit_bytes():
    # Per-generation VMEM budget with headroom for Pallas double buffers and
    # internal scratch (v5e/v6e: 128 MiB physical, v7x: 64 MiB per TensorCore).
    try:
        cap = int(getattr(pltpu.get_tpu_info(), "vmem_capacity_bytes",
                          64 * 1024 * 1024))
    except Exception:
        cap = 64 * 1024 * 1024
    return min((cap * 3) // 4, 100 * 1024 * 1024)


def basic_conv(x_nchw, weight_oihw, bn_gamma, bn_beta, bn_mean, bn_var, *,
               kernel_size, stride=1, dilation=1, groups=1, eps=1e-5):
    """BasicConv forward: Conv2d(bias=False) + BatchNorm2d (inference) + ReLU.

    x_nchw:      (N, Cin, H, W)
    weight_oihw: (Cout, Cin, K, K)   (PyTorch conv weight layout)
    bn_*:        (Cout,)
    returns:     (N, Cout, H, W)
    """
    if stride != 1:
        raise NotImplementedError("stride != 1 is not supported by this kernel")
    if groups != 1:
        raise NotImplementedError("groups != 1 is not supported by this kernel")
    if kernel_size % 2 != 1:
        raise NotImplementedError("even kernel_size not supported (padding rule)")

    N, Cin, H, W = x_nchw.shape
    Cout, Cin_w, K, K2 = weight_oihw.shape
    assert K == kernel_size and K2 == kernel_size and Cin_w == Cin

    pad = ((K - 1) // 2) * dilation
    Hp, Wp = H + 2 * pad, W + 2 * pad

    LANE = 128
    SUB = 16       # bf16 sublane packing -> unmasked output stores
    M_CAP = 256    # fills the 256-tall v6e/v7x MXU; two clean passes on v5e's 128

    # Pad Cout up to a lane multiple -> unmasked stores + full MXU N dimension.
    Cout_p = ((Cout + LANE - 1) // LANE) * LANE

    # H-row tile: largest divisor of H with TH*W <= M_CAP; M padded to 16 so the
    # output block's second-to-last dim always satisfies the bf16 tiling rule.
    TH = 1
    for cand in range(1, H + 1):
        if H % cand == 0 and cand * W <= M_CAP:
            TH = cand
    M = TH * W
    M_pad = ((M + SUB - 1) // SUB) * SUB
    n_ht = H // TH

    # ---- wrapper-side glue (layout, padding, BN folding) --------------------
    # TODO(synk): keep NHWC end-to-end / fuse pad+transpose into the producer to
    # avoid these extra HBM passes (kept here so the module contract stays NCHW).
    x_nhwc = jnp.transpose(x_nchw, (0, 2, 3, 1)).astype(jnp.bfloat16)
    x_pad = jnp.pad(x_nhwc, ((0, 0), (pad, pad), (pad, pad), (0, 0)))

    scale = (bn_gamma / jnp.sqrt(bn_var + eps)).astype(jnp.float32)      # (Cout,)
    shift = (bn_beta - bn_mean * scale).astype(jnp.float32)              # (Cout,)
    # HWIO weights * scale -> pad Cout -> im2col-ordered (K*K*Cin, Cout_p) matrix.
    w_hwio = jnp.transpose(weight_oihw, (2, 3, 1, 0)).astype(jnp.float32) * scale
    w_pad = jnp.pad(w_hwio, ((0, 0), (0, 0), (0, 0), (0, Cout_p - Cout)))
    w_mat = w_pad.reshape(K * K * Cin, Cout_p).astype(jnp.bfloat16)
    shift_p = jnp.pad(shift, (0, Cout_p - Cout)).reshape(1, Cout_p)

    kernel = functools.partial(_conv_bn_relu_kernel, kernel_size=K,
                               dilation=dilation, tile_h=TH, out_w=W, m_pad=M_pad)

    out = pl.pallas_call(
        kernel,
        out_shape=jax.ShapeDtypeStruct((N, n_ht, M_pad, Cout_p), jnp.bfloat16),
        grid_spec=pltpu.PrefetchScalarGridSpec(
            num_scalar_prefetch=0,
            grid=(N, n_ht),
            in_specs=[
                # Whole padded image per batch element; block index is constant
                # over h, so it is DMA'd once per n and reused across h-tiles.
                # TODO(synk): on v7x (64 MiB VMEM/TC) switch to halo row tiling or
                # memory_space=pl.ANY + manual double-buffered row DMA, and
                # single-buffer the constant-index weight/shift blocks.
                pl.BlockSpec((1, Hp, Wp, Cin), lambda n, h: (n, 0, 0, 0)),
                pl.BlockSpec((K * K * Cin, Cout_p), lambda n, h: (0, 0)),
                pl.BlockSpec((1, Cout_p), lambda n, h: (0, 0)),
            ],
            out_specs=pl.BlockSpec((1, 1, M_pad, Cout_p),
                                   lambda n, h: (n, h, 0, 0)),
        ),
        compiler_params=pltpu.CompilerParams(
            # Shard the batch axis across cores; h stays "arbitrary" so both v7x
            # cores never DMA the same per-n image into separate VMEMs.
            dimension_semantics=("parallel", "arbitrary"),
            vmem_limit_bytes=_vmem_limit_bytes(),
        ),
    )(x_pad, w_mat, shift_p)

    out = out[:, :, :M, :Cout].reshape(N, H, W, Cout)
    return jnp.transpose(out, (0, 3, 1, 2)).astype(x_nchw.dtype)


def _reference(x_nchw, weight_oihw, gamma, beta, mean, var,
               *, kernel_size, dilation=1, eps=1e-5):
    pad = ((kernel_size - 1) // 2) * dilation
    y = jax.lax.conv_general_dilated(
        x_nchw, weight_oihw,
        window_strides=(1, 1),
        padding=((pad, pad), (pad, pad)),
        rhs_dilation=(dilation, dilation),
        dimension_numbers=("NCHW", "OIHW", "NCHW"),
    )
    s = gamma / jnp.sqrt(var + eps)
    b = beta - mean * s
    y = y * s[None, :, None, None] + b[None, :, None, None]
    return jnp.maximum(y, 0.0)


if __name__ == "__main__":
    key = jax.random.PRNGKey(0)
    k_x, k_w, k_g, k_b, k_m, k_v = jax.random.split(key, 6)

    N, Cin, H, W = 2, 4, 16, 16
    Cout, K = 8, 3

    x = jax.random.normal(k_x, (N, Cin, H, W), jnp.float32)
    weight = 0.1 * jax.random.normal(k_w, (Cout, Cin, K, K), jnp.float32)
    gamma = 1.0 + 0.1 * jax.random.normal(k_g, (Cout,), jnp.float32)
    beta = 0.1 * jax.random.normal(k_b, (Cout,), jnp.float32)
    running_mean = 0.1 * jax.random.normal(k_m, (Cout,), jnp.float32)
    running_var = jnp.abs(1.0 + 0.1 * jax.random.normal(k_v, (Cout,), jnp.float32))

    out = basic_conv(x, weight, gamma, beta, running_mean, running_var,
                     kernel_size=K, dilation=1)
    out = jax.block_until_ready(out)

    ref = _reference(x, weight, gamma, beta, running_mean, running_var,
                     kernel_size=K, dilation=1)
    assert out.shape == (N, Cout, H, W)
    # bf16 MXU operands + bf16 output store (f32 accumulation) -> looser tolerance.
    assert jnp.allclose(out, ref, atol=3e-2, rtol=3e-2), "mismatch vs reference"

    print("KERNEL_OK")
</pallas_src>

<mosaic_0001>
module attributes {stable_mosaic.version = 11 : i64} {
  func.func @_conv_bn_relu_kernel(%arg0: i32, %arg1: i32, %arg2: memref<1x18x18x4xbf16, #tpu.memory_space<vmem>>, %arg3: memref<36x128xbf16, #tpu.memory_space<vmem>>, %arg4: memref<1x128xf32, #tpu.memory_space<vmem>>, %arg5: memref<1x1x256x128xbf16, #tpu.memory_space<vmem>>) attributes {dimension_semantics = [#tpu.dimension_semantics<parallel>, #tpu.dimension_semantics<arbitrary>], iteration_bounds = array<i64: 2, 1>, scalar_prefetch = 0 : i64, scratch_operands = 0 : i64, tpu.core_type = #tpu.core_type<tc>, window_params = [{transform_indices = @transform_0, window_bounds = array<i64: 1, 18, 18, 4>}, {pipeline_mode = #tpu.pipeline_mode<synchronous>, transform_indices = @transform_1, window_bounds = array<i64: 36, 128>}, {pipeline_mode = #tpu.pipeline_mode<synchronous>, transform_indices = @transform_2, window_bounds = array<i64: 1, 128>}, {transform_indices = @transform_3, window_bounds = array<i64: 1, 1, 256, 128>}]} {
    %c16_i32 = arith.constant 16 : i32
    %0 = arith.muli %arg1, %c16_i32 : i32
    %c0_i32 = arith.constant 0 : i32
    %1 = arith.addi %0, %c0_i32 : i32
    %c0 = arith.constant 0 : index
    %2 = arith.index_cast %1 : i32 to index
    %c0_0 = arith.constant 0 : index
    %c0_1 = arith.constant 0 : index
    %3 = vector.load %arg2[%c0, %2, %c0_0, %c0_1] : memref<1x18x18x4xbf16, #tpu.memory_space<vmem>>, vector<1x16x18x4xbf16>
    %4 = vector.shape_cast %3 : vector<1x16x18x4xbf16> to vector<16x18x4xbf16>
    %5 = vector.extract_strided_slice %4 {offsets = [0, 0, 0], sizes = [16, 16, 4], strides = [1, 1, 1]} : vector<16x18x4xbf16> to vector<16x16x4xbf16>
    %6 = vector.shape_cast %5 : vector<16x16x4xbf16> to vector<256x4xbf16>
    %7 = vector.extract_strided_slice %4 {offsets = [0, 1, 0], sizes = [16, 16, 4], strides = [1, 1, 1]} : vector<16x18x4xbf16> to vector<16x16x4xbf16>
    %8 = vector.shape_cast %7 : vector<16x16x4xbf16> to vector<256x4xbf16>
    %9 = vector.extract_strided_slice %4 {offsets = [0, 2, 0], sizes = [16, 16, 4], strides = [1, 1, 1]} : vector<16x18x4xbf16> to vector<16x16x4xbf16>
    %10 = vector.shape_cast %9 : vector<16x16x4xbf16> to vector<256x4xbf16>
    %c1_i32 = arith.constant 1 : i32
    %11 = arith.addi %0, %c1_i32 : i32
    %c0_2 = arith.constant 0 : index
    %12 = arith.index_cast %11 : i32 to index
    %c0_3 = arith.constant 0 : index
    %c0_4 = arith.constant 0 : index
    %13 = vector.load %arg2[%c0_2, %12, %c0_3, %c0_4] : memref<1x18x18x4xbf16, #tpu.memory_space<vmem>>, vector<1x16x18x4xbf16>
    %14 = vector.shape_cast %13 : vector<1x16x18x4xbf16> to vector<16x18x4xbf16>
    %15 = vector.extract_strided_slice %14 {offsets = [0, 0, 0], sizes = [16, 16, 4], strides = [1, 1, 1]} : vector<16x18x4xbf16> to vector<16x16x4xbf16>
    %16 = vector.shape_cast %15 : vector<16x16x4xbf16> to vector<256x4xbf16>
    %17 = vector.extract_strided_slice %14 {offsets = [0, 1, 0], sizes = [16, 16, 4], strides = [1, 1, 1]} : vector<16x18x4xbf16> to vector<16x16x4xbf16>
    %18 = vector.shape_cast %17 : vector<16x16x4xbf16> to vector<256x4xbf16>
    %19 = vector.extract_strided_slice %14 {offsets = [0, 2, 0], sizes = [16, 16, 4], strides = [1, 1, 1]} : vector<16x18x4xbf16> to vector<16x16x4xbf16>
    %20 = vector.shape_cast %19 : vector<16x16x4xbf16> to vector<256x4xbf16>
    %c2_i32 = arith.constant 2 : i32
    %21 = arith.addi %0, %c2_i32 : i32
    %c0_5 = arith.constant 0 : index
    %22 = arith.index_cast %21 : i32 to index
    %c0_6 = arith.constant 0 : index
    %c0_7 = arith.constant 0 : index
    %23 = vector.load %arg2[%c0_5, %22, %c0_6, %c0_7] : memref<1x18x18x4xbf16, #tpu.memory_space<vmem>>, vector<1x16x18x4xbf16>
    %24 = vector.shape_cast %23 : vector<1x16x18x4xbf16> to vector<16x18x4xbf16>
    %25 = vector.extract_strided_slice %24 {offsets = [0, 0, 0], sizes = [16, 16, 4], strides = [1, 1, 1]} : vector<16x18x4xbf16> to vector<16x16x4xbf16>
    %26 = vector.shape_cast %25 : vector<16x16x4xbf16> to vector<256x4xbf16>
    %27 = vector.extract_strided_slice %24 {offsets = [0, 1, 0], sizes = [16, 16, 4], strides = [1, 1, 1]} : vector<16x18x4xbf16> to vector<16x16x4xbf16>
    %28 = vector.shape_cast %27 : vector<16x16x4xbf16> to vector<256x4xbf16>
    %29 = vector.extract_strided_slice %24 {offsets = [0, 2, 0], sizes = [16, 16, 4], strides = [1, 1, 1]} : vector<16x18x4xbf16> to vector<16x16x4xbf16>
    %30 = vector.shape_cast %29 : vector<16x16x4xbf16> to vector<256x4xbf16>
    %31 = tpu.concatenate %6, %8, %10, %16, %18, %20, %26, %28, %30 in 1 : vector<256x4xbf16>, vector<256x4xbf16>, vector<256x4xbf16>, vector<256x4xbf16>, vector<256x4xbf16>, vector<256x4xbf16>, vector<256x4xbf16>, vector<256x4xbf16>, vector<256x4xbf16> -> vector<256x36xbf16>
    %c0_8 = arith.constant 0 : index
    %c0_9 = arith.constant 0 : index
    %32 = vector.load %arg3[%c0_8, %c0_9] : memref<36x128xbf16, #tpu.memory_space<vmem>>, vector<36x128xbf16>
    %cst = arith.constant dense<0.000000e+00> : vector<256x128xf32>
    %33 = tpu.matmul %31, %32, %cst {dimension_numbers = #tpu.dot_dimension_numbers<[1], [0], [0], [1], [0, 0, 1, 1], [], []>} : vector<256x36xbf16>, vector<36x128xbf16>, vector<256x128xf32> -> vector<256x128xf32>
    %c0_10 = arith.constant 0 : index
    %c0_11 = arith.constant 0 : index
    %34 = vector.load %arg4[%c0_10, %c0_11] : memref<1x128xf32, #tpu.memory_space<vmem>>, vector<1x128xf32>
    %35 = vector.broadcast %34 : vector<1x128xf32> to vector<256x128xf32>
    %36 = arith.addf %33, %35 : vector<256x128xf32>
    %cst_12 = arith.constant 0.000000e+00 : f32
    %37 = vector.broadcast %cst_12 : f32 to vector<256x128xf32>
    %38 = arith.maximumf %36, %37 : vector<256x128xf32>
    %39 = arith.truncf %38 : vector<256x128xf32> to vector<256x128xbf16>
    %c0_13 = arith.constant 0 : index
    %c0_14 = arith.constant 0 : index
    %c0_15 = arith.constant 0 : index
    %c0_16 = arith.constant 0 : index
    %40 = vector.load %arg5[%c0_13, %c0_14, %c0_15, %c0_16] : memref<1x1x256x128xbf16, #tpu.memory_space<vmem>>, vector<1x1x256x128xbf16>
    %41 = vector.shape_cast %40 : vector<1x1x256x128xbf16> to vector<256x128xbf16>
    %42 = vector.shape_cast %39 : vector<256x128xbf16> to vector<1x1x256x128xbf16>
    tpu.vector_store %arg5[%c0_13, %c0_14, %c0_15, %c0_16], %42 {strides = array<i32>} : memref<1x1x256x128xbf16, #tpu.memory_space<vmem>>, vector<1x1x256x128xbf16>,
    return
  }
  func.func @transform_0(%arg0: i32, %arg1: i32) -> (i32, i32, i32, i32) {
    %c0_i32 = arith.constant 0 : i32
    %c0_i32_0 = arith.constant 0 : i32
    %c0_i32_1 = arith.constant 0 : i32
    %c0_i32_2 = arith.constant 0 : i32
    return %arg0, %c0_i32, %c0_i32_0, %c0_i32_1 : i32, i32, i32, i32
  }
  func.func @transform_1(%arg0: i32, %arg1: i32) -> (i32, i32) {
    %c0_i32 = arith.constant 0 : i32
    %c0_i32_0 = arith.constant 0 : i32
    %c0_i32_1 = arith.constant 0 : i32
    return %c0_i32, %c0_i32_0 : i32, i32
  }
  func.func @transform_2(%arg0: i32, %arg1: i32) -> (i32, i32) {
    %c0_i32 = arith.constant 0 : i32
    %c0_i32_0 = arith.constant 0 : i32
    %c0_i32_1 = arith.constant 0 : i32
    return %c0_i32, %c0_i32_0 : i32, i32
  }
  func.func @transform_3(%arg0: i32, %arg1: i32) -> (i32, i32, i32, i32) {
    %c0_i32 = arith.constant 0 : i32
    %c0_i32_0 = arith.constant 0 : i32
    %c0_i32_1 = arith.constant 0 : i32
    return %arg0, %arg1, %c0_i32, %c0_i32_0 : i32, i32, i32, i32
  }
}

</mosaic_0001>

<llo_original>
// kernel: tpu_custom_call.1
$region0: #{tpu_custom_call.1}
  #allocation0 [shape = 'u32[]', space=smem, size = 0x4, offset = 0x4, fixed_abs, tag = 'smem constant byte address 0x4 - core index']
  #allocation1 [shape = 'u32[144,128]{1,0:T(1,128)}', space=vmem, size = 0x12000, scoped, tag = 'internal scratch']
  %s0 = inlined_call_operand.vmem [shape: bf16[2,18,18,4], index: 0, kind: input, shape index: {}]
  %s1 = inlined_call_operand.vmem [shape: bf16[36,128], index: 1, kind: input, shape index: {}]
  %s2 = inlined_call_operand.vmem [shape: f32[1,128], index: 2, kind: input, shape index: {}]
  %s3 = inlined_call_operand.hbm [shape: bf16[2,1,256,128], index: 3, kind: output, shape index: {}]
  %s4 = sld [smem:[#allocation0]]
  $region45: #{tpu_custom_call.1} parent=0
    _
  %s6 = ssub.s32 1, %s4
  %s7 = scalar_select 0, %s6, %s4
  $region1: #{tpu_custom_call.1} parent=0
    #allocation2 [shape = 'u8[131072]{0}', space=vmem, size = 0x20000, scoped, tag = 'output window, operand 0']
    #allocation3 [shape = 's32[2]{0}', space=sflag, size = 0x8, scoped, tag = 'scoped memory for tpu_custom_call.1']
    %8 = vsyncpa [#allocation3], 0
    %s9 = scalar_lea.sflag [#allocation3], 1
    %10 = vsyncpa %s9, 0
    loop: start=0, step=1, limit=4
    $region2: #{tpu_custom_call.1} parent=1 // loop_pre_header
      _
    $region3: #{tpu_custom_call.1} parent=1 // loop_header
      %s12 = sphi 0, %s16
      %p13 = scmp.ge.s32.totalorder %s12, 4
      %s19 = sphi 0, %s31
      %s20 = sphi 0, %s27
      %s21 = sphi 0, %s19
      %s22 = sphi 0, %s20
      %s23 = sphi 0, %s21
      %s24 = sphi 0, %s22
      %s34 = sphi 0, %s36
      %s37 = sphi 0, %s34
      %s38 = sphi 0, %s37
      %s54 = sphi 0, %s38
      %s58 = sphi 0, %s58
      %s60 = sphi 0, %s58
      %s61 = sphi 0, %s60
      %s75 = sphi 0, %s61
      %s79 = sphi 0, %s79
      %s81 = sphi 0, %s79
      %s82 = sphi 0, %s81
      %s96 = sphi 0, %s82
      %s104 = sphi 0, %s106
      %s107 = sphi 0, %s104
      %s108 = sphi 0, %s107
      %s124 = sphi 0, %s108
    $region4: #{tpu_custom_call.1} parent=1 // loop_header_branch
      %15 = sbr.rel (%p13) target = $region8
    $region5: #{tpu_custom_call.1} parent=1 // loop_body
      %s17 = ssub.s32 %s12, 1
      %s18 = ssub.s32 %s12, 2
      %s25 = sadd.s32 1, %s20
      %p26 = scmp.ge.s32.totalorder %s25, 1
      %s27 = scalar_select %p26, 0, %s25
      %s28 = sadd.s32 1, %s19
      %s29 = scalar_select %p26, %s28, %s19
      %p30 = scmp.ge.s32.totalorder %s29, 2
      %s31 = scalar_select %p30, 0, %s29
      %s32 = ssub.s32 %s19, %s31
      %p33 = scmp.eq.s32.totalorder %s32, 0
      %s35 = sadd.s32 %s34, 1
      %s36 = scalar_select %p33, %s34, %s35
      %p39 = pneg %p33
      %p40 = scmp.eq.s32.totalorder %s12, 1
      %p41 = por %p39, %p40
      %p42 = scmp.ne.s32.totalorder %s34, %s37
      %p43 = scmp.eq.s32.totalorder %s12, 0
      %p44 = por %p42, %p43
      %p45 = scmp.ne.s32.totalorder %s34, %s37
      %p46 = scmp.eq.s32.totalorder %s17, 1
      %p47 = por %p45, %p46
      %p48 = scmp.ne.s32.totalorder %s37, %s38
      %p49 = scmp.eq.s32.totalorder %s17, 0
      %p50 = por %p48, %p49
      %p51 = scmp.ne.s32.totalorder %s37, %s38
      %p52 = scmp.eq.s32.totalorder %s18, 1
      %p53 = por %p51, %p52
      %p55 = scmp.ne.s32.totalorder %s38, %s54
      %p56 = scmp.eq.s32.totalorder %s18, 0
      %p57 = por %p55, %p56
      %s59 = sadd.s32 %s58, 1
      %p62 = scmp.eq.s32.totalorder %s12, 1
      %p63 = scmp.ne.s32.totalorder %s58, %s60
      %p64 = scmp.eq.s32.totalorder %s12, 0
      %p65 = por %p63, %p64
      %p66 = scmp.ne.s32.totalorder %s58, %s60
      %p67 = scmp.eq.s32.totalorder %s17, 1
      %p68 = por %p66, %p67
      %p69 = scmp.ne.s32.totalorder %s60, %s61
      %p70 = scmp.eq.s32.totalorder %s17, 0
      %p71 = por %p69, %p70
      %p72 = scmp.ne.s32.totalorder %s60, %s61
      %p73 = scmp.eq.s32.totalorder %s18, 1
      %p74 = por %p72, %p73
      %p76 = scmp.ne.s32.totalorder %s61, %s75
      %p77 = scmp.eq.s32.totalorder %s18, 0
      %p78 = por %p76, %p77
      %s80 = sadd.s32 %s79, 1
      %p83 = scmp.eq.s32.totalorder %s12, 1
      %p84 = scmp.ne.s32.totalorder %s79, %s81
      %p85 = scmp.eq.s32.totalorder %s12, 0
      %p86 = por %p84, %p85
      %p87 = scmp.ne.s32.totalorder %s79, %s81
      %p88 = scmp.eq.s32.totalorder %s17, 1
      %p89 = por %p87, %p88
      %p90 = scmp.ne.s32.totalorder %s81, %s82
      %p91 = scmp.eq.s32.totalorder %s17, 0
      %p92 = por %p90, %p91
      %p93 = scmp.ne.s32.totalorder %s81, %s82
      %p94 = scmp.eq.s32.totalorder %s18, 1
      %p95 = por %p93, %p94
      %p97 = scmp.ne.s32.totalorder %s82, %s96
      %p98 = scmp.eq.s32.totalorder %s18, 0
      %p99 = por %p97, %p98
      %s100 = ssub.s32 %s19, %s31
      %s101 = ssub.s32 %s20, %s27
      %s102 = sor.u32 %s100, %s101
      %p103 = scmp.eq.s32.totalorder %s102, 0
      %s105 = sadd.s32 %s104, 1
      %s106 = scalar_select %p103, %s104, %s105
      %p109 = pneg %p103
      %p110 = scmp.eq.s32.totalorder %s12, 1
      %p111 = por %p109, %p110
      %p112 = scmp.ne.s32.totalorder %s104, %s107
      %p113 = scmp.eq.s32.totalorder %s12, 0
      %p114 = por %p112, %p113
      %p115 = scmp.ne.s32.totalorder %s104, %s107
      %p116 = scmp.eq.s32.totalorder %s17, 1
      %p117 = por %p115, %p116
      %p118 = scmp.ne.s32.totalorder %s107, %s108
      %p119 = scmp.eq.s32.totalorder %s17, 0
      %p120 = por %p118, %p119
      %p121 = scmp.ne.s32.totalorder %s107, %s108
      %p122 = scmp.eq.s32.totalorder %s18, 1
      %p123 = por %p121, %p122
      %p125 = scmp.ne.s32.totalorder %s108, %s124
      %p126 = scmp.eq.s32.totalorder %s18, 0
      %p127 = por %p125, %p126
      %p128 = scmp.le.s32.totalorder 1, %s12
      %p129 = scmp.lt.s32.totalorder %s12, 3
      %p130 = pnand %p128, %p129
      %p131 = pneg %p130
      // Predicated region
      $region9: #{tpu_custom_call.1} parent=5 // pred_check
        _
      $region10: #{tpu_custom_call.1} parent=5 // pred_check_branch
        %133 = sbr.rel (%p130) target = $region12
      $region11: #{tpu_custom_call.1} parent=5 // pred_region
        %s134 = ssub.s32 %s12, 1
        // Predicated region
        $region13: #{tpu_custom_call.1} parent=11 // pred_check
          %p135 = pneg %p71
        $region14: #{tpu_custom_call.1} parent=11 // pred_check_branch
          %137 = sbr.rel (%p135) target = $region16
        $region15: #{tpu_custom_call.1} parent=11 // pred_region
          _
        $region16: #{tpu_custom_call.1} parent=11 // pred_fallthru
          _
        // Predicated region
        $region17: #{tpu_custom_call.1} parent=11 // pred_check
          %p138 = pneg %p92
        $region18: #{tpu_custom_call.1} parent=11 // pred_check_branch
          %140 = sbr.rel (%p138) target = $region20
        $region19: #{tpu_custom_call.1} parent=11 // pred_region
          _
        $region20: #{tpu_custom_call.1} parent=11 // pred_fallthru
          _
      $region12: #{tpu_custom_call.1} parent=5 // pred_fallthru
        _
      %p141 = scmp.lt.s32.totalorder %s12, 2
      // Predicated region
      $region21: #{tpu_custom_call.1} parent=5 // pred_check
        %p142 = pneg %p141
      $region22: #{tpu_custom_call.1} parent=5 // pred_check_branch
        %144 = sbr.rel (%p142) target = $region24
      $region23: #{tpu_custom_call.1} parent=5 // pred_region
        // Predicated region
        $region25: #{tpu_custom_call.1} parent=23 // pred_check
          %p145 = pneg %p44
        $region26: #{tpu_custom_call.1} parent=23 // pred_check_branch
          %147 = sbr.rel (%p145) target = $region28
        $region27: #{tpu_custom_call.1} parent=23 // pred_region
          %p148 = scmp.lt.s32.totalorder %s19, 1
          %s149 = scalar_select %p148, %s19, 1
          %s150 = smul.addr %s149, 54
          %s151 = smul.addr %s150, 4
          %s152 = scalar_lea.vmem %s0, %s151
        $region28: #{tpu_custom_call.1} parent=23 // pred_fallthru
          _
      $region24: #{tpu_custom_call.1} parent=5 // pred_fallthru
        _
      %p153 = scmp.le.s32.totalorder 1, %s12
      %p154 = scmp.lt.s32.totalorder %s12, 3
      %p155 = pnand %p153, %p154
      %p156 = pneg %p155
      // Predicated region
      $region29: #{tpu_custom_call.1} parent=5 // pred_check
        _
      $region30: #{tpu_custom_call.1} parent=5 // pred_check_branch
        %158 = sbr.rel (%p155) target = $region32
      $region31: #{tpu_custom_call.1} parent=5 // pred_region
        %s159 = ssub.s32 %s12, 1
        %p160 = scmp.lt.s32.totalorder %s21, 1
        %s161 = scalar_select %p160, %s21, 1
        %s162 = smul.addr %s161, 54
        %s163 = smul.addr %s162, 4
        %s164 = scalar_lea.vmem %s0, %s163
        %p165 = pneg %p50
        %p166 = pneg %p47
        %p167 = pneg %p71
        %p168 = pneg %p68
        %p169 = pneg %p92
        %p170 = pneg %p89
        %p171 = pneg %p120
        %p172 = pneg %p117
        %s173 = sand.u32 %s107, 1
        %s174 = scalar_lea.sflag [#allocation3], %s173
        %s175 = sand.u32 %s107, 1
        %s176 = smul.addr %s175, 128
        %s177 = scalar_lea.vmem [#allocation2], %s176
        %p178 = scmp.lt.s32.totalorder %s21, 1
        %s179 = scalar_select %p178, %s21, 1
        %s180 = smul.addr %s179, 54
        %s181 = smul.addr %s180, 4
        %s182 = scalar_lea.vmem %s0, %s181
        %s184 = smul.u32 %s22, 16
        %s185 = smul.u32 %s184, 3
        %s186 = smul.addr %s185, 4
        %s187 = scalar_lea.vmem %s182, %s186
        %v188 = vld [vmem:[%s187] sm:$0xf]
        %v189 = vld [vmem:[%s187 + $0x4] sm:$0xf]
        %v190 = vld [vmem:[%s187 + $0x8] sm:$0x1]
        %v191 = vld [vmem:[%s187 + $0xc] sm:$0xf]
        %v192 = vld [vmem:[%s187 + $0x10] sm:$0xf]
        %v193 = vld [vmem:[%s187 + $0x14] sm:$0x1]
        %v194 = vld [vmem:[%s187 + $0x18] sm:$0xf]
        %v195 = vld [vmem:[%s187 + $0x1c] sm:$0xf]
        %v196 = vld [vmem:[%s187 + $0x20] sm:$0x1]
        %v197 = vld [vmem:[%s187 + $0x24] sm:$0xf]
        %v198 = vld [vmem:[%s187 + $0x28] sm:$0xf]
        %v199 = vld [vmem:[%s187 + $0x2c] sm:$0x1]
        %v200 = vld [vmem:[%s187 + $0x30] sm:$0xf]
        %v201 = vld [vmem:[%s187 + $0x34] sm:$0xf]
        %v202 = vld [vmem:[%s187 + $0x38] sm:$0x1]
        %v203 = vld [vmem:[%s187 + $0x3c] sm:$0xf]
        %v204 = vld [vmem:[%s187 + $0x40] sm:$0xf]
        %v205 = vld [vmem:[%s187 + $0x44] sm:$0x1]
        %v206 = vld [vmem:[%s187 + $0x48] sm:$0xf]
        %v207 = vld [vmem:[%s187 + $0x4c] sm:$0xf]
        %v208 = vld [vmem:[%s187 + $0x50] sm:$0x1]
        %v209 = vld [vmem:[%s187 + $0x54] sm:$0xf]
        %v210 = vld [vmem:[%s187 + $0x58] sm:$0xf]
        %v211 = vld [vmem:[%s187 + $0x5c] sm:$0x1]
        %v212 = vld [vmem:[%s187 + $0x60] sm:$0xf]
        %v213 = vld [vmem:[%s187 + $0x64] sm:$0xf]
        %v214 = vld [vmem:[%s187 + $0x68] sm:$0x1]
        %v215 = vld [vmem:[%s187 + $0x6c] sm:$0xf]
        %v216 = vld [vmem:[%s187 + $0x70] sm:$0xf]
        %v217 = vld [vmem:[%s187 + $0x74] sm:$0x1]
        %v218 = vld [vmem:[%s187 + $0x78] sm:$0xf]
        %v219 = vld [vmem:[%s187 + $0x7c] sm:$0xf]
        %v220 = vld [vmem:[%s187 + $0x80] sm:$0x1]
        %v221 = vld [vmem:[%s187 + $0x84] sm:$0xf]
        %v222 = vld [vmem:[%s187 + $0x88] sm:$0xf]
        %v223 = vld [vmem:[%s187 + $0x8c] sm:$0x1]
        %v224 = vld [vmem:[%s187 + $0x90] sm:$0xf]
        %v225 = vld [vmem:[%s187 + $0x94] sm:$0xf]
        %v226 = vld [vmem:[%s187 + $0x98] sm:$0x1]
        %v227 = vld [vmem:[%s187 + $0x9c] sm:$0xf]
        %v228 = vld [vmem:[%s187 + $0xa0] sm:$0xf]
        %v229 = vld [vmem:[%s187 + $0xa4] sm:$0x1]
        %v230 = vld [vmem:[%s187 + $0xa8] sm:$0xf]
        %v231 = vld [vmem:[%s187 + $0xac] sm:$0xf]
        %v232 = vld [vmem:[%s187 + $0xb0] sm:$0x1]
        %v233 = vld [vmem:[%s187 + $0xb4] sm:$0xf]
        %v234 = vld [vmem:[%s187 + $0xb8] sm:$0xf]
        %v235 = vld [vmem:[%s187 + $0xbc] sm:$0x1]
        %vm236 = vsmask.f32 3328
        %vm237 = vsmask.f32 7440
        %vm238 = vmor %vm236, %vm237
        %v240 = vshrl.u32 %v188, 16
        %v242 = vrot.slane %v240, 4
        %v243 = vshll.u32 %v188, 16
        %v245 = vrot.slane %v243, 5
        %v246 = vor.u32 %v242, %v245
        %v247 = vrot.slane %v246, 4
        %v249 = vshll.u32 %v189, 16
        %v251 = vrot.slane %v249, 5
        %v252 = vsel %vm238, %v247, %v251
        %v253 = vshrl.u32 %v189, 16
        %v255 = vrot.slane %v253, 4
        %v256 = vor.u32 %v255, %v251
        %v257 = vrot.slane %v256, 4
        %v259 = vshll.u32 %v190, 16
        %v261 = vrot.slane %v259, 5
        %v262 = vsel %vm238, %v257, %v261
        %v264 = vshrl.u32 %v191, 16
        %v266 = vrot.slane %v264, 4
        %v267 = vshll.u32 %v191, 16
        %v269 = vrot.slane %v267, 5
        %v270 = vor.u32 %v266, %v269
        %v271 = vrot.slane %v270, 4
        %v273 = vshll.u32 %v192, 16
        %v275 = vrot.slane %v273, 5
        %v276 = vsel %vm238, %v271, %v275
        %v277 = vshrl.u32 %v192, 16
        %v279 = vrot.slane %v277, 4
        %v280 = vor.u32 %v279, %v275
        %v281 = vrot.slane %v280, 4
        %v283 = vshll.u32 %v193, 16
        %v285 = vrot.slane %v283, 5
        %v286 = vsel %vm238, %v281, %v285
        %v288 = vshrl.u32 %v194, 16
        %v290 = vrot.slane %v288, 4
        %v291 = vshll.u32 %v194, 16
        %v293 = vrot.slane %v291, 5
        %v294 = vor.u32 %v290, %v293
        %v295 = vrot.slane %v294, 4
        %v297 = vshll.u32 %v195, 16
        %v299 = vrot.slane %v297, 5
        %v300 = vsel %vm238, %v295, %v299
        %v301 = vshrl.u32 %v195, 16
        %v303 = vrot.slane %v301, 4
        %v304 = vor.u32 %v303, %v299
        %v305 = vrot.slane %v304, 4
        %v307 = vshll.u32 %v196, 16
        %v309 = vrot.slane %v307, 5
        %v310 = vsel %vm238, %v305, %v309
        %v312 = vshrl.u32 %v197, 16
        %v314 = vrot.slane %v312, 4
        %v315 = vshll.u32 %v197, 16
        %v317 = vrot.slane %v315, 5
        %v318 = vor.u32 %v314, %v317
        %v319 = vrot.slane %v318, 4
        %v321 = vshll.u32 %v198, 16
        %v323 = vrot.slane %v321, 5
        %v324 = vsel %vm238, %v319, %v323
        %v325 = vshrl.u32 %v198, 16
        %v327 = vrot.slane %v325, 4
        %v328 = vor.u32 %v327, %v323
        %v329 = vrot.slane %v328, 4
        %v331 = vshll.u32 %v199, 16
        %v333 = vrot.slane %v331, 5
        %v334 = vsel %vm238, %v329, %v333
        %v336 = vshrl.u32 %v200, 16
        %v338 = vrot.slane %v336, 4
        %v339 = vshll.u32 %v200, 16
        %v341 = vrot.slane %v339, 5
        %v342 = vor.u32 %v338, %v341
        %v343 = vrot.slane %v342, 4
        %v345 = vshll.u32 %v201, 16
        %v347 = vrot.slane %v345, 5
        %v348 = vsel %vm238, %v343, %v347
        %v349 = vshrl.u32 %v201, 16
        %v351 = vrot.slane %v349, 4
        %v352 = vor.u32 %v351, %v347
        %v353 = vrot.slane %v352, 4
        %v355 = vshll.u32 %v202, 16
        %v357 = vrot.slane %v355, 5
        %v358 = vsel %vm238, %v353, %v357
        %v360 = vshrl.u32 %v203, 16
        %v362 = vrot.slane %v360, 4
        %v363 = vshll.u32 %v203, 16
        %v365 = vrot.slane %v363, 5
        %v366 = vor.u32 %v362, %v365
        %v367 = vrot.slane %v366, 4
        %v369 = vshll.u32 %v204, 16
        %v371 = vrot.slane %v369, 5
        %v372 = vsel %vm238, %v367, %v371
        %v373 = vshrl.u32 %v204, 16
        %v375 = vrot.slane %v373, 4
        %v376 = vor.u32 %v375, %v371
        %v377 = vrot.slane %v376, 4
        %v379 = vshll.u32 %v205, 16
        %v381 = vrot.slane %v379, 5
        %v382 = vsel %vm238, %v377, %v381
        %v384 = vshrl.u32 %v206, 16
        %v386 = vrot.slane %v384, 4
        %v387 = vshll.u32 %v206, 16
        %v389 = vrot.slane %v387, 5
        %v390 = vor.u32 %v386, %v389
        %v391 = vrot.slane %v390, 4
        %v393 = vshll.u32 %v207, 16
        %v395 = vrot.slane %v393, 5
        %v396 = vsel %vm238, %v391, %v395
        %v397 = vshrl.u32 %v207, 16
        %v399 = vrot.slane %v397, 4
        %v400 = vor.u32 %v399, %v395
        %v401 = vrot.slane %v400, 4
        %v403 = vshll.u32 %v208, 16
        %v405 = vrot.slane %v403, 5
        %v406 = vsel %vm238, %v401, %v405
        %v408 = vshrl.u32 %v209, 16
        %v410 = vrot.slane %v408, 4
        %v411 = vshll.u32 %v209, 16
        %v413 = vrot.slane %v411, 5
        %v414 = vor.u32 %v410, %v413
        %v415 = vrot.slane %v414, 4
        %v417 = vshll.u32 %v210, 16
        %v419 = vrot.slane %v417, 5
        %v420 = vsel %vm238, %v415, %v419
        %v421 = vshrl.u32 %v210, 16
        %v423 = vrot.slane %v421, 4
        %v424 = vor.u32 %v423, %v419
        %v425 = vrot.slane %v424, 4
        %v427 = vshll.u32 %v211, 16
        %v429 = vrot.slane %v427, 5
        %v430 = vsel %vm238, %v425, %v429
        %v432 = vshrl.u32 %v212, 16
        %v434 = vrot.slane %v432, 4
        %v435 = vshll.u32 %v212, 16
        %v437 = vrot.slane %v435, 5
        %v438 = vor.u32 %v434, %v437
        %v439 = vrot.slane %v438, 4
        %v441 = vshll.u32 %v213, 16
        %v443 = vrot.slane %v441, 5
        %v444 = vsel %vm238, %v439, %v443
        %v445 = vshrl.u32 %v213, 16
        %v447 = vrot.slane %v445, 4
        %v448 = vor.u32 %v447, %v443
        %v449 = vrot.slane %v448, 4
        %v451 = vshll.u32 %v214, 16
        %v453 = vrot.slane %v451, 5
        %v454 = vsel %vm238, %v449, %v453
        %v456 = vshrl.u32 %v215, 16
        %v458 = vrot.slane %v456, 4
        %v459 = vshll.u32 %v215, 16
        %v461 = vrot.slane %v459, 5
        %v462 = vor.u32 %v458, %v461
        %v463 = vrot.slane %v462, 4
        %v465 = vshll.u32 %v216, 16
        %v467 = vrot.slane %v465, 5
        %v468 = vsel %vm238, %v463, %v467
        %v469 = vshrl.u32 %v216, 16
        %v471 = vrot.slane %v469, 4
        %v472 = vor.u32 %v471, %v467
        %v473 = vrot.slane %v472, 4
        %v475 = vshll.u32 %v217, 16
        %v477 = vrot.slane %v475, 5
        %v478 = vsel %vm238, %v473, %v477
        %v480 = vshrl.u32 %v218, 16
        %v482 = vrot.slane %v480, 4
        %v483 = vshll.u32 %v218, 16
        %v485 = vrot.slane %v483, 5
        %v486 = vor.u32 %v482, %v485
        %v487 = vrot.slane %v486, 4
        %v489 = vshll.u32 %v219, 16
        %v491 = vrot.slane %v489, 5
        %v492 = vsel %vm238, %v487, %v491
        %v493 = vshrl.u32 %v219, 16
        %v495 = vrot.slane %v493, 4
        %v496 = vor.u32 %v495, %v491
        %v497 = vrot.slane %v496, 4
        %v499 = vshll.u32 %v220, 16
        %v501 = vrot.slane %v499, 5
        %v502 = vsel %vm238, %v497, %v501
        %v504 = vshrl.u32 %v221, 16
        %v506 = vrot.slane %v504, 4
        %v507 = vshll.u32 %v221, 16
        %v509 = vrot.slane %v507, 5
        %v510 = vor.u32 %v506, %v509
        %v511 = vrot.slane %v510, 4
        %v513 = vshll.u32 %v222, 16
        %v515 = vrot.slane %v513, 5
        %v516 = vsel %vm238, %v511, %v515
        %v517 = vshrl.u32 %v222, 16
        %v519 = vrot.slane %v517, 4
        %v520 = vor.u32 %v519, %v515
        %v521 = vrot.slane %v520, 4
        %v523 = vshll.u32 %v223, 16
        %v525 = vrot.slane %v523, 5
        %v526 = vsel %vm238, %v521, %v525
        %v528 = vshrl.u32 %v224, 16
        %v530 = vrot.slane %v528, 4
        %v531 = vshll.u32 %v224, 16
        %v533 = vrot.slane %v531, 5
        %v534 = vor.u32 %v530, %v533
        %v535 = vrot.slane %v534, 4
        %v537 = vshll.u32 %v225, 16
        %v539 = vrot.slane %v537, 5
        %v540 = vsel %vm238, %v535, %v539
        %v541 = vshrl.u32 %v225, 16
        %v543 = vrot.slane %v541, 4
        %v544 = vor.u32 %v543, %v539
        %v545 = vrot.slane %v544, 4
        %v547 = vshll.u32 %v226, 16
        %v549 = vrot.slane %v547, 5
        %v550 = vsel %vm238, %v545, %v549
        %v552 = vshrl.u32 %v227, 16
        %v554 = vrot.slane %v552, 4
        %v555 = vshll.u32 %v227, 16
        %v557 = vrot.slane %v555, 5
        %v558 = vor.u32 %v554, %v557
        %v559 = vrot.slane %v558, 4
        %v561 = vshll.u32 %v228, 16
        %v563 = vrot.slane %v561, 5
        %v564 = vsel %vm238, %v559, %v563
        %v565 = vshrl.u32 %v228, 16
        %v567 = vrot.slane %v565, 4
        %v568 = vor.u32 %v567, %v563
        %v569 = vrot.slane %v568, 4
        %v571 = vshll.u32 %v229, 16
        %v573 = vrot.slane %v571, 5
        %v574 = vsel %vm238, %v569, %v573
        %v576 = vshrl.u32 %v230, 16
        %v578 = vrot.slane %v576, 4
        %v579 = vshll.u32 %v230, 16
        %v581 = vrot.slane %v579, 5
        %v582 = vor.u32 %v578, %v581
        %v583 = vrot.slane %v582, 4
        %v585 = vshll.u32 %v231, 16
        %v587 = vrot.slane %v585, 5
        %v588 = vsel %vm238, %v583, %v587
        %v589 = vshrl.u32 %v231, 16
        %v591 = vrot.slane %v589, 4
        %v592 = vor.u32 %v591, %v587
        %v593 = vrot.slane %v592, 4
        %v595 = vshll.u32 %v232, 16
        %v597 = vrot.slane %v595, 5
        %v598 = vsel %vm238, %v593, %v597
        %v600 = vshrl.u32 %v233, 16
        %v602 = vrot.slane %v600, 4
        %v603 = vshll.u32 %v233, 16
        %v605 = vrot.slane %v603, 5
        %v606 = vor.u32 %v602, %v605
        %v607 = vrot.slane %v606, 4
        %v609 = vshll.u32 %v234, 16
        %v611 = vrot.slane %v609, 5
        %v612 = vsel %vm238, %v607, %v611
        %v613 = vshrl.u32 %v234, 16
        %v615 = vrot.slane %v613, 4
        %v616 = vor.u32 %v615, %v611
        %v617 = vrot.slane %v616, 4
        %v619 = vshll.u32 %v235, 16
        %v621 = vrot.slane %v619, 5
        %v622 = vsel %vm238, %v617, %v621
        %vm671 = vcmask 1042432
        %vm672 = vcmask 1046532
        %vm673 = vmor %vm671, %vm672
        %v674 = vrot.slane %v188, 5
        %v675 = vrot.slane %v674, 4
        %v676 = vrot.slane %v189, 5
        %v677 = vsel %vm673, %v675, %v676
        %v678 = vrot.slane %v676, 4
        %v679 = vrot.slane %v190, 5
        %v680 = vsel %vm673, %v678, %v679
        %v681 = vrot.slane %v191, 5
        %v682 = vrot.slane %v681, 4
        %v683 = vrot.slane %v192, 5
        %v684 = vsel %vm673, %v682, %v683
        %v685 = vrot.slane %v683, 4
        %v686 = vrot.slane %v193, 5
        %v687 = vsel %vm673, %v685, %v686
        %v688 = vrot.slane %v194, 5
        %v689 = vrot.slane %v688, 4
        %v690 = vrot.slane %v195, 5
        %v691 = vsel %vm673, %v689, %v690
        %v692 = vrot.slane %v690, 4
        %v693 = vrot.slane %v196, 5
        %v694 = vsel %vm673, %v692, %v693
        %v695 = vrot.slane %v197, 5
        %v696 = vrot.slane %v695, 4
        %v697 = vrot.slane %v198, 5
        %v698 = vsel %vm673, %v696, %v697
        %v699 = vrot.slane %v697, 4
        %v700 = vrot.slane %v199, 5
        %v701 = vsel %vm673, %v699, %v700
        %v702 = vrot.slane %v200, 5
        %v703 = vrot.slane %v702, 4
        %v704 = vrot.slane %v201, 5
        %v705 = vsel %vm673, %v703, %v704
        %v706 = vrot.slane %v704, 4
        %v707 = vrot.slane %v202, 5
        %v708 = vsel %vm673, %v706, %v707
        %v709 = vrot.slane %v203, 5
        %v710 = vrot.slane %v709, 4
        %v711 = vrot.slane %v204, 5
        %v712 = vsel %vm673, %v710, %v711
        %v713 = vrot.slane %v711, 4
        %v714 = vrot.slane %v205, 5
        %v715 = vsel %vm673, %v713, %v714
        %v716 = vrot.slane %v206, 5
        %v717 = vrot.slane %v716, 4
        %v718 = vrot.slane %v207, 5
        %v719 = vsel %vm673, %v717, %v718
        %v720 = vrot.slane %v718, 4
        %v721 = vrot.slane %v208, 5
        %v722 = vsel %vm673, %v720, %v721
        %v723 = vrot.slane %v209, 5
        %v724 = vrot.slane %v723, 4
        %v725 = vrot.slane %v210, 5
        %v726 = vsel %vm673, %v724, %v725
        %v727 = vrot.slane %v725, 4
        %v728 = vrot.slane %v211, 5
        %v729 = vsel %vm673, %v727, %v728
        %v730 = vrot.slane %v212, 5
        %v731 = vrot.slane %v730, 4
        %v732 = vrot.slane %v213, 5
        %v733 = vsel %vm673, %v731, %v732
        %v734 = vrot.slane %v732, 4
        %v735 = vrot.slane %v214, 5
        %v736 = vsel %vm673, %v734, %v735
        %v737 = vrot.slane %v215, 5
        %v738 = vrot.slane %v737, 4
        %v739 = vrot.slane %v216, 5
        %v740 = vsel %vm673, %v738, %v739
        %v741 = vrot.slane %v739, 4
        %v742 = vrot.slane %v217, 5
        %v743 = vsel %vm673, %v741, %v742
        %v744 = vrot.slane %v218, 5
        %v745 = vrot.slane %v744, 4
        %v746 = vrot.slane %v219, 5
        %v747 = vsel %vm673, %v745, %v746
        %v748 = vrot.slane %v746, 4
        %v749 = vrot.slane %v220, 5
        %v750 = vsel %vm673, %v748, %v749
        %v751 = vrot.slane %v221, 5
        %v752 = vrot.slane %v751, 4
        %v753 = vrot.slane %v222, 5
        %v754 = vsel %vm673, %v752, %v753
        %v755 = vrot.slane %v753, 4
        %v756 = vrot.slane %v223, 5
        %v757 = vsel %vm673, %v755, %v756
        %v758 = vrot.slane %v224, 5
        %v759 = vrot.slane %v758, 4
        %v760 = vrot.slane %v225, 5
        %v761 = vsel %vm673, %v759, %v760
        %v762 = vrot.slane %v760, 4
        %v763 = vrot.slane %v226, 5
        %v764 = vsel %vm673, %v762, %v763
        %v765 = vrot.slane %v227, 5
        %v766 = vrot.slane %v765, 4
        %v767 = vrot.slane %v228, 5
        %v768 = vsel %vm673, %v766, %v767
        %v769 = vrot.slane %v767, 4
        %v770 = vrot.slane %v229, 5
        %v771 = vsel %vm673, %v769, %v770
        %v772 = vrot.slane %v230, 5
        %v773 = vrot.slane %v772, 4
        %v774 = vrot.slane %v231, 5
        %v775 = vsel %vm673, %v773, %v774
        %v776 = vrot.slane %v774, 4
        %v777 = vrot.slane %v232, 5
        %v778 = vsel %vm673, %v776, %v777
        %v779 = vrot.slane %v233, 5
        %v780 = vrot.slane %v779, 4
        %v781 = vrot.slane %v234, 5
        %v782 = vsel %vm673, %v780, %v781
        %v783 = vrot.slane %v781, 4
        %v784 = vrot.slane %v235, 5
        %v785 = vsel %vm673, %v783, %v784
        %s786 = sadd.s32 %s184, 1
        %s787 = smul.u32 %s786, 3
        %s788 = smul.addr %s787, 4
        %s789 = scalar_lea.vmem %s182, %s788
        %v790 = vld [vmem:[%s789] sm:$0xf]
        %v791 = vld [vmem:[%s789 + $0x4] sm:$0xf]
        %v792 = vld [vmem:[%s789 + $0x8] sm:$0x1]
        %v793 = vld [vmem:[%s789 + $0xc] sm:$0xf]
        %v794 = vld [vmem:[%s789 + $0x10] sm:$0xf]
        %v795 = vld [vmem:[%s789 + $0x14] sm:$0x1]
        %v796 = vld [vmem:[%s789 + $0x18] sm:$0xf]
        %v797 = vld [vmem:[%s789 + $0x1c] sm:$0xf]
        %v798 = vld [vmem:[%s789 + $0x20] sm:$0x1]
        %v799 = vld [vmem:[%s789 + $0x24] sm:$0xf]
        %v800 = vld [vmem:[%s789 + $0x28] sm:$0xf]
        %v801 = vld [vmem:[%s789 + $0x2c] sm:$0x1]
        %v802 = vld [vmem:[%s789 + $0x30] sm:$0xf]
        %v803 = vld [vmem:[%s789 + $0x34] sm:$0xf]
        %v804 = vld [vmem:[%s789 + $0x38] sm:$0x1]
        %v805 = vld [vmem:[%s789 + $0x3c] sm:$0xf]
        %v806 = vld [vmem:[%s789 + $0x40] sm:$0xf]
        %v807 = vld [vmem:[%s789 + $0x44] sm:$0x1]
        %v808 = vld [vmem:[%s789 + $0x48] sm:$0xf]
        %v809 = vld [vmem:[%s789 + $0x4c] sm:$0xf]
        %v810 = vld [vmem:[%s789 + $0x50] sm:$0x1]
        %v811 = vld [vmem:[%s789 + $0x54] sm:$0xf]
        %v812 = vld [vmem:[%s789 + $0x58] sm:$0xf]
        %v813 = vld [vmem:[%s789 + $0x5c] sm:$0x1]
        %v814 = vld [vmem:[%s789 + $0x60] sm:$0xf]
        %v815 = vld [vmem:[%s789 + $0x64] sm:$0xf]
        %v816 = vld [vmem:[%s789 + $0x68] sm:$0x1]
        %v817 = vld [vmem:[%s789 + $0x6c] sm:$0xf]
        %v818 = vld [vmem:[%s789 + $0x70] sm:$0xf]
        %v819 = vld [vmem:[%s789 + $0x74] sm:$0x1]
        %v820 = vld [vmem:[%s789 + $0x78] sm:$0xf]
        %v821 = vld [vmem:[%s789 + $0x7c] sm:$0xf]
        %v822 = vld [vmem:[%s789 + $0x80] sm:$0x1]
        %v823 = vld [vmem:[%s789 + $0x84] sm:$0xf]
        %v824 = vld [vmem:[%s789 + $0x88] sm:$0xf]
        %v825 = vld [vmem:[%s789 + $0x8c] sm:$0x1]
        %v826 = vld [vmem:[%s789 + $0x90] sm:$0xf]
        %v827 = vld [vmem:[%s789 + $0x94] sm:$0xf]
        %v828 = vld [vmem:[%s789 + $0x98] sm:$0x1]
        %v829 = vld [vmem:[%s789 + $0x9c] sm:$0xf]
        %v830 = vld [vmem:[%s789 + $0xa0] sm:$0xf]
        %v831 = vld [vmem:[%s789 + $0xa4] sm:$0x1]
        %v832 = vld [vmem:[%s789 + $0xa8] sm:$0xf]
        %v833 = vld [vmem:[%s789 + $0xac] sm:$0xf]
        %v834 = vld [vmem:[%s789 + $0xb0] sm:$0x1]
        %v835 = vld [vmem:[%s789 + $0xb4] sm:$0xf]
        %v836 = vld [vmem:[%s789 + $0xb8] sm:$0xf]
        %v837 = vld [vmem:[%s789 + $0xbc] sm:$0x1]
        %v839 = vshrl.u32 %v790, 16
        %v841 = vrot.slane %v839, 4
        %v842 = vshll.u32 %v790, 16
        %v844 = vrot.slane %v842, 5
        %v845 = vor.u32 %v841, %v844
        %v846 = vrot.slane %v845, 4
        %v848 = vshll.u32 %v791, 16
        %v850 = vrot.slane %v848, 5
        %v851 = vsel %vm238, %v846, %v850
        %v852 = vshrl.u32 %v791, 16
        %v854 = vrot.slane %v852, 4
        %v855 = vor.u32 %v854, %v850
        %v856 = vrot.slane %v855, 4
        %v858 = vshll.u32 %v792, 16
        %v860 = vrot.slane %v858, 5
        %v861 = vsel %vm238, %v856, %v860
        %v863 = vshrl.u32 %v793, 16
        %v865 = vrot.slane %v863, 4
        %v866 = vshll.u32 %v793, 16
        %v868 = vrot.slane %v866, 5
        %v869 = vor.u32 %v865, %v868
        %v870 = vrot.slane %v869, 4
        %v872 = vshll.u32 %v794, 16
        %v874 = vrot.slane %v872, 5
        %v875 = vsel %vm238, %v870, %v874
        %v876 = vshrl.u32 %v794, 16
        %v878 = vrot.slane %v876, 4
        %v879 = vor.u32 %v878, %v874
        %v880 = vrot.slane %v879, 4
        %v882 = vshll.u32 %v795, 16
        %v884 = vrot.slane %v882, 5
        %v885 = vsel %vm238, %v880, %v884
        %v887 = vshrl.u32 %v796, 16
        %v889 = vrot.slane %v887, 4
        %v890 = vshll.u32 %v796, 16
        %v892 = vrot.slane %v890, 5
        %v893 = vor.u32 %v889, %v892
        %v894 = vrot.slane %v893, 4
        %v896 = vshll.u32 %v797, 16
        %v898 = vrot.slane %v896, 5
        %v899 = vsel %vm238, %v894, %v898
        %v900 = vshrl.u32 %v797, 16
        %v902 = vrot.slane %v900, 4
        %v903 = vor.u32 %v902, %v898
        %v904 = vrot.slane %v903, 4
        %v906 = vshll.u32 %v798, 16
        %v908 = vrot.slane %v906, 5
        %v909 = vsel %vm238, %v904, %v908
        %v911 = vshrl.u32 %v799, 16
        %v913 = vrot.slane %v911, 4
        %v914 = vshll.u32 %v799, 16
        %v916 = vrot.slane %v914, 5
        %v917 = vor.u32 %v913, %v916
        %v918 = vrot.slane %v917, 4
        %v920 = vshll.u32 %v800, 16
        %v922 = vrot.slane %v920, 5
        %v923 = vsel %vm238, %v918, %v922
        %v924 = vshrl.u32 %v800, 16
        %v926 = vrot.slane %v924, 4
        %v927 = vor.u32 %v926, %v922
        %v928 = vrot.slane %v927, 4
        %v930 = vshll.u32 %v801, 16
        %v932 = vrot.slane %v930, 5
        %v933 = vsel %vm238, %v928, %v932
        %v935 = vshrl.u32 %v802, 16
        %v937 = vrot.slane %v935, 4
        %v938 = vshll.u32 %v802, 16
        %v940 = vrot.slane %v938, 5
        %v941 = vor.u32 %v937, %v940
        %v942 = vrot.slane %v941, 4
        %v944 = vshll.u32 %v803, 16
        %v946 = vrot.slane %v944, 5
        %v947 = vsel %vm238, %v942, %v946
        %v948 = vshrl.u32 %v803, 16
        %v950 = vrot.slane %v948, 4
        %v951 = vor.u32 %v950, %v946
        %v952 = vrot.slane %v951, 4
        %v954 = vshll.u32 %v804, 16
        %v956 = vrot.slane %v954, 5
        %v957 = vsel %vm238, %v952, %v956
        %v959 = vshrl.u32 %v805, 16
        %v961 = vrot.slane %v959, 4
        %v962 = vshll.u32 %v805, 16
        %v964 = vrot.slane %v962, 5
        %v965 = vor.u32 %v961, %v964
        %v966 = vrot.slane %v965, 4
        %v968 = vshll.u32 %v806, 16
        %v970 = vrot.slane %v968, 5
        %v971 = vsel %vm238, %v966, %v970
        %v972 = vshrl.u32 %v806, 16
        %v974 = vrot.slane %v972, 4
        %v975 = vor.u32 %v974, %v970
        %v976 = vrot.slane %v975, 4
        %v978 = vshll.u32 %v807, 16
        %v980 = vrot.slane %v978, 5
        %v981 = vsel %vm238, %v976, %v980
        %v983 = vshrl.u32 %v808, 16
        %v985 = vrot.slane %v983, 4
        %v986 = vshll.u32 %v808, 16
        %v988 = vrot.slane %v986, 5
        %v989 = vor.u32 %v985, %v988
        %v990 = vrot.slane %v989, 4
        %v992 = vshll.u32 %v809, 16
        %v994 = vrot.slane %v992, 5
        %v995 = vsel %vm238, %v990, %v994
        %v996 = vshrl.u32 %v809, 16
        %v998 = vrot.slane %v996, 4
        %v999 = vor.u32 %v998, %v994
        %v1000 = vrot.slane %v999, 4
        %v1002 = vshll.u32 %v810, 16
        %v1004 = vrot.slane %v1002, 5
        %v1005 = vsel %vm238, %v1000, %v1004
        %v1007 = vshrl.u32 %v811, 16
        %v1009 = vrot.slane %v1007, 4
        %v1010 = vshll.u32 %v811, 16
        %v1012 = vrot.slane %v1010, 5
        %v1013 = vor.u32 %v1009, %v1012
        %v1014 = vrot.slane %v1013, 4
        %v1016 = vshll.u32 %v812, 16
        %v1018 = vrot.slane %v1016, 5
        %v1019 = vsel %vm238, %v1014, %v1018
        %v1020 = vshrl.u32 %v812, 16
        %v1022 = vrot.slane %v1020, 4
        %v1023 = vor.u32 %v1022, %v1018
        %v1024 = vrot.slane %v1023, 4
        %v1026 = vshll.u32 %v813, 16
        %v1028 = vrot.slane %v1026, 5
        %v1029 = vsel %vm238, %v1024, %v1028
        %v1031 = vshrl.u32 %v814, 16
        %v1033 = vrot.slane %v1031, 4
        %v1034 = vshll.u32 %v814, 16
        %v1036 = vrot.slane %v1034, 5
        %v1037 = vor.u32 %v1033, %v1036
        %v1038 = vrot.slane %v1037, 4
        %v1040 = vshll.u32 %v815, 16
        %v1042 = vrot.slane %v1040, 5
        %v1043 = vsel %vm238, %v1038, %v1042
        %v1044 = vshrl.u32 %v815, 16
        %v1046 = vrot.slane %v1044, 4
        %v1047 = vor.u32 %v1046, %v1042
        %v1048 = vrot.slane %v1047, 4
        %v1050 = vshll.u32 %v816, 16
        %v1052 = vrot.slane %v1050, 5
        %v1053 = vsel %vm238, %v1048, %v1052
        %v1055 = vshrl.u32 %v817, 16
        %v1057 = vrot.slane %v1055, 4
        %v1058 = vshll.u32 %v817, 16
        %v1060 = vrot.slane %v1058, 5
        %v1061 = vor.u32 %v1057, %v1060
        %v1062 = vrot.slane %v1061, 4
        %v1064 = vshll.u32 %v818, 16
        %v1066 = vrot.slane %v1064, 5
        %v1067 = vsel %vm238, %v1062, %v1066
        %v1068 = vshrl.u32 %v818, 16
        %v1070 = vrot.slane %v1068, 4
        %v1071 = vor.u32 %v1070, %v1066
        %v1072 = vrot.slane %v1071, 4
        %v1074 = vshll.u32 %v819, 16
        %v1076 = vrot.slane %v1074, 5
        %v1077 = vsel %vm238, %v1072, %v1076
        %v1079 = vshrl.u32 %v820, 16
        %v1081 = vrot.slane %v1079, 4
        %v1082 = vshll.u32 %v820, 16
        %v1084 = vrot.slane %v1082, 5
        %v1085 = vor.u32 %v1081, %v1084
        %v1086 = vrot.slane %v1085, 4
        %v1088 = vshll.u32 %v821, 16
        %v1090 = vrot.slane %v1088, 5
        %v1091 = vsel %vm238, %v1086, %v1090
        %v1092 = vshrl.u32 %v821, 16
        %v1094 = vrot.slane %v1092, 4
        %v1095 = vor.u32 %v1094, %v1090
        %v1096 = vrot.slane %v1095, 4
        %v1098 = vshll.u32 %v822, 16
        %v1100 = vrot.slane %v1098, 5
        %v1101 = vsel %vm238, %v1096, %v1100
        %v1103 = vshrl.u32 %v823, 16
        %v1105 = vrot.slane %v1103, 4
        %v1106 = vshll.u32 %v823, 16
        %v1108 = vrot.slane %v1106, 5
        %v1109 = vor.u32 %v1105, %v1108
        %v1110 = vrot.slane %v1109, 4
        %v1112 = vshll.u32 %v824, 16
        %v1114 = vrot.slane %v1112, 5
        %v1115 = vsel %vm238, %v1110, %v1114
        %v1116 = vshrl.u32 %v824, 16
        %v1118 = vrot.slane %v1116, 4
        %v1119 = vor.u32 %v1118, %v1114
        %v1120 = vrot.slane %v1119, 4
        %v1122 = vshll.u32 %v825, 16
        %v1124 = vrot.slane %v1122, 5
        %v1125 = vsel %vm238, %v1120, %v1124
        %v1127 = vshrl.u32 %v826, 16
        %v1129 = vrot.slane %v1127, 4
        %v1130 = vshll.u32 %v826, 16
        %v1132 = vrot.slane %v1130, 5
        %v1133 = vor.u32 %v1129, %v1132
        %v1134 = vrot.slane %v1133, 4
        %v1136 = vshll.u32 %v827, 16
        %v1138 = vrot.slane %v1136, 5
        %v1139 = vsel %vm238, %v1134, %v1138
        %v1140 = vshrl.u32 %v827, 16
        %v1142 = vrot.slane %v1140, 4
        %v1143 = vor.u32 %v1142, %v1138
        %v1144 = vrot.slane %v1143, 4
        %v1146 = vshll.u32 %v828, 16
        %v1148 = vrot.slane %v1146, 5
        %v1149 = vsel %vm238, %v1144, %v1148
        %v1151 = vshrl.u32 %v829, 16
        %v1153 = vrot.slane %v1151, 4
        %v1154 = vshll.u32 %v829, 16
        %v1156 = vrot.slane %v1154, 5
        %v1157 = vor.u32 %v1153, %v1156
        %v1158 = vrot.slane %v1157, 4
        %v1160 = vshll.u32 %v830, 16
        %v1162 = vrot.slane %v1160, 5
        %v1163 = vsel %vm238, %v1158, %v1162
        %v1164 = vshrl.u32 %v830, 16
        %v1166 = vrot.slane %v1164, 4
        %v1167 = vor.u32 %v1166, %v1162
        %v1168 = vrot.slane %v1167, 4
        %v1170 = vshll.u32 %v831, 16
        %v1172 = vrot.slane %v1170, 5
        %v1173 = vsel %vm238, %v1168, %v1172
        %v1175 = vshrl.u32 %v832, 16
        %v1177 = vrot.slane %v1175, 4
        %v1178 = vshll.u32 %v832, 16
        %v1180 = vrot.slane %v1178, 5
        %v1181 = vor.u32 %v1177, %v1180
        %v1182 = vrot.slane %v1181, 4
        %v1184 = vshll.u32 %v833, 16
        %v1186 = vrot.slane %v1184, 5
        %v1187 = vsel %vm238, %v1182, %v1186
        %v1188 = vshrl.u32 %v833, 16
        %v1190 = vrot.slane %v1188, 4
        %v1191 = vor.u32 %v1190, %v1186
        %v1192 = vrot.slane %v1191, 4
        %v1194 = vshll.u32 %v834, 16
        %v1196 = vrot.slane %v1194, 5
        %v1197 = vsel %vm238, %v1192, %v1196
        %v1199 = vshrl.u32 %v835, 16
        %v1201 = vrot.slane %v1199, 4
        %v1202 = vshll.u32 %v835, 16
        %v1204 = vrot.slane %v1202, 5
        %v1205 = vor.u32 %v1201, %v1204
        %v1206 = vrot.slane %v1205, 4
        %v1208 = vshll.u32 %v836, 16
        %v1210 = vrot.slane %v1208, 5
        %v1211 = vsel %vm238, %v1206, %v1210
        %v1212 = vshrl.u32 %v836, 16
        %v1214 = vrot.slane %v1212, 4
        %v1215 = vor.u32 %v1214, %v1210
        %v1216 = vrot.slane %v1215, 4
        %v1218 = vshll.u32 %v837, 16
        %v1220 = vrot.slane %v1218, 5
        %v1221 = vsel %vm238, %v1216, %v1220
        %v1270 = vrot.slane %v790, 5
        %v1271 = vrot.slane %v1270, 4
        %v1272 = vrot.slane %v791, 5
        %v1273 = vsel %vm673, %v1271, %v1272
        %v1274 = vrot.slane %v1272, 4
        %v1275 = vrot.slane %v792, 5
        %v1276 = vsel %vm673, %v1274, %v1275
        %v1277 = vrot.slane %v793, 5
        %v1278 = vrot.slane %v1277, 4
        %v1279 = vrot.slane %v794, 5
        %v1280 = vsel %vm673, %v1278, %v1279
        %v1281 = vrot.slane %v1279, 4
        %v1282 = vrot.slane %v795, 5
        %v1283 = vsel %vm673, %v1281, %v1282
        %v1284 = vrot.slane %v796, 5
        %v1285 = vrot.slane %v1284, 4
        %v1286 = vrot.slane %v797, 5
        %v1287 = vsel %vm673, %v1285, %v1286
        %v1288 = vrot.slane %v1286, 4
        %v1289 = vrot.slane %v798, 5
        %v1290 = vsel %vm673, %v1288, %v1289
        %v1291 = vrot.slane %v799, 5
        %v1292 = vrot.slane %v1291, 4
        %v1293 = vrot.slane %v800, 5
        %v1294 = vsel %vm673, %v1292, %v1293
        %v1295 = vrot.slane %v1293, 4
        %v1296 = vrot.slane %v801, 5
        %v1297 = vsel %vm673, %v1295, %v1296
        %v1298 = vrot.slane %v802, 5
        %v1299 = vrot.slane %v1298, 4
        %v1300 = vrot.slane %v803, 5
        %v1301 = vsel %vm673, %v1299, %v1300
        %v1302 = vrot.slane %v1300, 4
        %v1303 = vrot.slane %v804, 5
        %v1304 = vsel %vm673, %v1302, %v1303
        %v1305 = vrot.slane %v805, 5
        %v1306 = vrot.slane %v1305, 4
        %v1307 = vrot.slane %v806, 5
        %v1308 = vsel %vm673, %v1306, %v1307
        %v1309 = vrot.slane %v1307, 4
        %v1310 = vrot.slane %v807, 5
        %v1311 = vsel %vm673, %v1309, %v1310
        %v1312 = vrot.slane %v808, 5
        %v1313 = vrot.slane %v1312, 4
        %v1314 = vrot.slane %v809, 5
        %v1315 = vsel %vm673, %v1313, %v1314
        %v1316 = vrot.slane %v1314, 4
        %v1317 = vrot.slane %v810, 5
        %v1318 = vsel %vm673, %v1316, %v1317
        %v1319 = vrot.slane %v811, 5
        %v1320 = vrot.slane %v1319, 4
        %v1321 = vrot.slane %v812, 5
        %v1322 = vsel %vm673, %v1320, %v1321
        %v1323 = vrot.slane %v1321, 4
        %v1324 = vrot.slane %v813, 5
        %v1325 = vsel %vm673, %v1323, %v1324
        %v1326 = vrot.slane %v814, 5
        %v1327 = vrot.slane %v1326, 4
        %v1328 = vrot.slane %v815, 5
        %v1329 = vsel %vm673, %v1327, %v1328
        %v1330 = vrot.slane %v1328, 4
        %v1331 = vrot.slane %v816, 5
        %v1332 = vsel %vm673, %v1330, %v1331
        %v1333 = vrot.slane %v817, 5
        %v1334 = vrot.slane %v1333, 4
        %v1335 = vrot.slane %v818, 5
        %v1336 = vsel %vm673, %v1334, %v1335
        %v1337 = vrot.slane %v1335, 4
        %v1338 = vrot.slane %v819, 5
        %v1339 = vsel %vm673, %v1337, %v1338
        %v1340 = vrot.slane %v820, 5
        %v1341 = vrot.slane %v1340, 4
        %v1342 = vrot.slane %v821, 5
        %v1343 = vsel %vm673, %v1341, %v1342
        %v1344 = vrot.slane %v1342, 4
        %v1345 = vrot.slane %v822, 5
        %v1346 = vsel %vm673, %v1344, %v1345
        %v1347 = vrot.slane %v823, 5
        %v1348 = vrot.slane %v1347, 4
        %v1349 = vrot.slane %v824, 5
        %v1350 = vsel %vm673, %v1348, %v1349
        %v1351 = vrot.slane %v1349, 4
        %v1352 = vrot.slane %v825, 5
        %v1353 = vsel %vm673, %v1351, %v1352
        %v1354 = vrot.slane %v826, 5
        %v1355 = vrot.slane %v1354, 4
        %v1356 = vrot.slane %v827, 5
        %v1357 = vsel %vm673, %v1355, %v1356
        %v1358 = vrot.slane %v1356, 4
        %v1359 = vrot.slane %v828, 5
        %v1360 = vsel %vm673, %v1358, %v1359
        %v1361 = vrot.slane %v829, 5
        %v1362 = vrot.slane %v1361, 4
        %v1363 = vrot.slane %v830, 5
        %v1364 = vsel %vm673, %v1362, %v1363
        %v1365 = vrot.slane %v1363, 4
        %v1366 = vrot.slane %v831, 5
        %v1367 = vsel %vm673, %v1365, %v1366
        %v1368 = vrot.slane %v832, 5
        %v1369 = vrot.slane %v1368, 4
        %v1370 = vrot.slane %v833, 5
        %v1371 = vsel %vm673, %v1369, %v1370
        %v1372 = vrot.slane %v1370, 4
        %v1373 = vrot.slane %v834, 5
        %v1374 = vsel %vm673, %v1372, %v1373
        %v1375 = vrot.slane %v835, 5
        %v1376 = vrot.slane %v1375, 4
        %v1377 = vrot.slane %v836, 5
        %v1378 = vsel %vm673, %v1376, %v1377
        %v1379 = vrot.slane %v1377, 4
        %v1380 = vrot.slane %v837, 5
        %v1381 = vsel %vm673, %v1379, %v1380
        %s1382 = sadd.s32 %s184, 2
        %s1383 = smul.u32 %s1382, 3
        %s1384 = smul.addr %s1383, 4
        %s1385 = scalar_lea.vmem %s182, %s1384
        %v1386 = vld [vmem:[%s1385] sm:$0xf]
        %v1387 = vld [vmem:[%s1385 + $0x4] sm:$0xf]
        %v1388 = vld [vmem:[%s1385 + $0x8] sm:$0x1]
        %v1389 = vld [vmem:[%s1385 + $0xc] sm:$0xf]
        %v1390 = vld [vmem:[%s1385 + $0x10] sm:$0xf]
        %v1391 = vld [vmem:[%s1385 + $0x14] sm:$0x1]
        %v1392 = vld [vmem:[%s1385 + $0x18] sm:$0xf]
        %v1393 = vld [vmem:[%s1385 + $0x1c] sm:$0xf]
        %v1394 = vld [vmem:[%s1385 + $0x20] sm:$0x1]
        %v1395 = vld [vmem:[%s1385 + $0x24] sm:$0xf]
        %v1396 = vld [vmem:[%s1385 + $0x28] sm:$0xf]
        %v1397 = vld [vmem:[%s1385 + $0x2c] sm:$0x1]
        %v1398 = vld [vmem:[%s1385 + $0x30] sm:$0xf]
        %v1399 = vld [vmem:[%s1385 + $0x34] sm:$0xf]
        %v1400 = vld [vmem:[%s1385 + $0x38] sm:$0x1]
        %v1401 = vld [vmem:[%s1385 + $0x3c] sm:$0xf]
        %v1402 = vld [vmem:[%s1385 + $0x40] sm:$0xf]
        %v1403 = vld [vmem:[%s1385 + $0x44] sm:$0x1]
        %v1404 = vld [vmem:[%s1385 + $0x48] sm:$0xf]
        %v1405 = vld [vmem:[%s1385 + $0x4c] sm:$0xf]
        %v1406 = vld [vmem:[%s1385 + $0x50] sm:$0x1]
        %v1407 = vld [vmem:[%s1385 + $0x54] sm:$0xf]
        %v1408 = vld [vmem:[%s1385 + $0x58] sm:$0xf]
        %v1409 = vld [vmem:[%s1385 + $0x5c] sm:$0x1]
        %v1410 = vld [vmem:[%s1385 + $0x60] sm:$0xf]
        %v1411 = vld [vmem:[%s1385 + $0x64] sm:$0xf]
        %v1412 = vld [vmem:[%s1385 + $0x68] sm:$0x1]
        %v1413 = vld [vmem:[%s1385 + $0x6c] sm:$0xf]
        %v1414 = vld [vmem:[%s1385 + $0x70] sm:$0xf]
        %v1415 = vld [vmem:[%s1385 + $0x74] sm:$0x1]
        %v1416 = vld [vmem:[%s1385 + $0x78] sm:$0xf]
        %v1417 = vld [vmem:[%s1385 + $0x7c] sm:$0xf]
        %v1418 = vld [vmem:[%s1385 + $0x80] sm:$0x1]
        %v1419 = vld [vmem:[%s1385 + $0x84] sm:$0xf]
        %v1420 = vld [vmem:[%s1385 + $0x88] sm:$0xf]
        %v1421 = vld [vmem:[%s1385 + $0x8c] sm:$0x1]
        %v1422 = vld [vmem:[%s1385 + $0x90] sm:$0xf]
        %v1423 = vld [vmem:[%s1385 + $0x94] sm:$0xf]
        %v1424 = vld [vmem:[%s1385 + $0x98] sm:$0x1]
        %v1425 = vld [vmem:[%s1385 + $0x9c] sm:$0xf]
        %v1426 = vld [vmem:[%s1385 + $0xa0] sm:$0xf]
        %v1427 = vld [vmem:[%s1385 + $0xa4] sm:$0x1]
        %v1428 = vld [vmem:[%s1385 + $0xa8] sm:$0xf]
        %v1429 = vld [vmem:[%s1385 + $0xac] sm:$0xf]
        %v1430 = vld [vmem:[%s1385 + $0xb0] sm:$0x1]
        %v1431 = vld [vmem:[%s1385 + $0xb4] sm:$0xf]
        %v1432 = vld [vmem:[%s1385 + $0xb8] sm:$0xf]
        %v1433 = vld [vmem:[%s1385 + $0xbc] sm:$0x1]
        %v1435 = vshrl.u32 %v1386, 16
        %v1437 = vrot.slane %v1435, 4
        %v1438 = vshll.u32 %v1386, 16
        %v1440 = vrot.slane %v1438, 5
        %v1441 = vor.u32 %v1437, %v1440
        %v1442 = vrot.slane %v1441, 4
        %v1444 = vshll.u32 %v1387, 16
        %v1446 = vrot.slane %v1444, 5
        %v1447 = vsel %vm238, %v1442, %v1446
        %v1448 = vshrl.u32 %v1387, 16
        %v1450 = vrot.slane %v1448, 4
        %v1451 = vor.u32 %v1450, %v1446
        %v1452 = vrot.slane %v1451, 4
        %v1454 = vshll.u32 %v1388, 16
        %v1456 = vrot.slane %v1454, 5
        %v1457 = vsel %vm238, %v1452, %v1456
        %v1459 = vshrl.u32 %v1389, 16
        %v1461 = vrot.slane %v1459, 4
        %v1462 = vshll.u32 %v1389, 16
        %v1464 = vrot.slane %v1462, 5
        %v1465 = vor.u32 %v1461, %v1464
        %v1466 = vrot.slane %v1465, 4
        %v1468 = vshll.u32 %v1390, 16
        %v1470 = vrot.slane %v1468, 5
        %v1471 = vsel %vm238, %v1466, %v1470
        %v1472 = vshrl.u32 %v1390, 16
        %v1474 = vrot.slane %v1472, 4
        %v1475 = vor.u32 %v1474, %v1470
        %v1476 = vrot.slane %v1475, 4
        %v1478 = vshll.u32 %v1391, 16
        %v1480 = vrot.slane %v1478, 5
        %v1481 = vsel %vm238, %v1476, %v1480
        %v1483 = vshrl.u32 %v1392, 16
        %v1485 = vrot.slane %v1483, 4
        %v1486 = vshll.u32 %v1392, 16
        %v1488 = vrot.slane %v1486, 5
        %v1489 = vor.u32 %v1485, %v1488
        %v1490 = vrot.slane %v1489, 4
        %v1492 = vshll.u32 %v1393, 16
        %v1494 = vrot.slane %v1492, 5
        %v1495 = vsel %vm238, %v1490, %v1494
        %v1496 = vshrl.u32 %v1393, 16
        %v1498 = vrot.slane %v1496, 4
        %v1499 = vor.u32 %v1498, %v1494
        %v1500 = vrot.slane %v1499, 4
        %v1502 = vshll.u32 %v1394, 16
        %v1504 = vrot.slane %v1502, 5
        %v1505 = vsel %vm238, %v1500, %v1504
        %v1507 = vshrl.u32 %v1395, 16
        %v1509 = vrot.slane %v1507, 4
        %v1510 = vshll.u32 %v1395, 16
        %v1512 = vrot.slane %v1510, 5
        %v1513 = vor.u32 %v1509, %v1512
        %v1514 = vrot.slane %v1513, 4
        %v1516 = vshll.u32 %v1396, 16
        %v1518 = vrot.slane %v1516, 5
        %v1519 = vsel %vm238, %v1514, %v1518
        %v1520 = vshrl.u32 %v1396, 16
        %v1522 = vrot.slane %v1520, 4
        %v1523 = vor.u32 %v1522, %v1518
        %v1524 = vrot.slane %v1523, 4
        %v1526 = vshll.u32 %v1397, 16
        %v1528 = vrot.slane %v1526, 5
        %v1529 = vsel %vm238, %v1524, %v1528
        %v1531 = vshrl.u32 %v1398, 16
        %v1533 = vrot.slane %v1531, 4
        %v1534 = vshll.u32 %v1398, 16
        %v1536 = vrot.slane %v1534, 5
        %v1537 = vor.u32 %v1533, %v1536
        %v1538 = vrot.slane %v1537, 4
        %v1540 = vshll.u32 %v1399, 16
        %v1542 = vrot.slane %v1540, 5
        %v1543 = vsel %vm238, %v1538, %v1542
        %v1544 = vshrl.u32 %v1399, 16
        %v1546 = vrot.slane %v1544, 4
        %v1547 = vor.u32 %v1546, %v1542
        %v1548 = vrot.slane %v1547, 4
        %v1550 = vshll.u32 %v1400, 16
        %v1552 = vrot.slane %v1550, 5
        %v1553 = vsel %vm238, %v1548, %v1552
        %v1555 = vshrl.u32 %v1401, 16
        %v1557 = vrot.slane %v1555, 4
        %v1558 = vshll.u32 %v1401, 16
        %v1560 = vrot.slane %v1558, 5
        %v1561 = vor.u32 %v1557, %v1560
        %v1562 = vrot.slane %v1561, 4
        %v1564 = vshll.u32 %v1402, 16
        %v1566 = vrot.slane %v1564, 5
        %v1567 = vsel %vm238, %v1562, %v1566
        %v1568 = vshrl.u32 %v1402, 16
        %v1570 = vrot.slane %v1568, 4
        %v1571 = vor.u32 %v1570, %v1566
        %v1572 = vrot.slane %v1571, 4
        %v1574 = vshll.u32 %v1403, 16
        %v1576 = vrot.slane %v1574, 5
        %v1577 = vsel %vm238, %v1572, %v1576
        %v1579 = vshrl.u32 %v1404, 16
        %v1581 = vrot.slane %v1579, 4
        %v1582 = vshll.u32 %v1404, 16
        %v1584 = vrot.slane %v1582, 5
        %v1585 = vor.u32 %v1581, %v1584
        %v1586 = vrot.slane %v1585, 4
        %v1588 = vshll.u32 %v1405, 16
        %v1590 = vrot.slane %v1588, 5
        %v1591 = vsel %vm238, %v1586, %v1590
        %v1592 = vshrl.u32 %v1405, 16
        %v1594 = vrot.slane %v1592, 4
        %v1595 = vor.u32 %v1594, %v1590
        %v1596 = vrot.slane %v1595, 4
        %v1598 = vshll.u32 %v1406, 16
        %v1600 = vrot.slane %v1598, 5
        %v1601 = vsel %vm238, %v1596, %v1600
        %v1603 = vshrl.u32 %v1407, 16
        %v1605 = vrot.slane %v1603, 4
        %v1606 = vshll.u32 %v1407, 16
        %v1608 = vrot.slane %v1606, 5
        %v1609 = vor.u32 %v1605, %v1608
        %v1610 = vrot.slane %v1609, 4
        %v1612 = vshll.u32 %v1408, 16
        %v1614 = vrot.slane %v1612, 5
        %v1615 = vsel %vm238, %v1610, %v1614
        %v1616 = vshrl.u32 %v1408, 16
        %v1618 = vrot.slane %v1616, 4
        %v1619 = vor.u32 %v1618, %v1614
        %v1620 = vrot.slane %v1619, 4
        %v1622 = vshll.u32 %v1409, 16
        %v1624 = vrot.slane %v1622, 5
        %v1625 = vsel %vm238, %v1620, %v1624
        %v1627 = vshrl.u32 %v1410, 16
        %v1629 = vrot.slane %v1627, 4
        %v1630 = vshll.u32 %v1410, 16
        %v1632 = vrot.slane %v1630, 5
        %v1633 = vor.u32 %v1629, %v1632
        %v1634 = vrot.slane %v1633, 4
        %v1636 = vshll.u32 %v1411, 16
        %v1638 = vrot.slane %v1636, 5
        %v1639 = vsel %vm238, %v1634, %v1638
        %v1640 = vshrl.u32 %v1411, 16
        %v1642 = vrot.slane %v1640, 4
        %v1643 = vor.u32 %v1642, %v1638
        %v1644 = vrot.slane %v1643, 4
        %v1646 = vshll.u32 %v1412, 16
        %v1648 = vrot.slane %v1646, 5
        %v1649 = vsel %vm238, %v1644, %v1648
        %v1651 = vshrl.u32 %v1413, 16
        %v1653 = vrot.slane %v1651, 4
        %v1654 = vshll.u32 %v1413, 16
        %v1656 = vrot.slane %v1654, 5
        %v1657 = vor.u32 %v1653, %v1656
        %v1658 = vrot.slane %v1657, 4
        %v1660 = vshll.u32 %v1414, 16
        %v1662 = vrot.slane %v1660, 5
        %v1663 = vsel %vm238, %v1658, %v1662
        %v1664 = vshrl.u32 %v1414, 16
        %v1666 = vrot.slane %v1664, 4
        %v1667 = vor.u32 %v1666, %v1662
        %v1668 = vrot.slane %v1667, 4
        %v1670 = vshll.u32 %v1415, 16
        %v1672 = vrot.slane %v1670, 5
        %v1673 = vsel %vm238, %v1668, %v1672
        %v1675 = vshrl.u32 %v1416, 16
        %v1677 = vrot.slane %v1675, 4
        %v1678 = vshll.u32 %v1416, 16
        %v1680 = vrot.slane %v1678, 5
        %v1681 = vor.u32 %v1677, %v1680
        %v1682 = vrot.slane %v1681, 4
        %v1684 = vshll.u32 %v1417, 16
        %v1686 = vrot.slane %v1684, 5
        %v1687 = vsel %vm238, %v1682, %v1686
        %v1688 = vshrl.u32 %v1417, 16
        %v1690 = vrot.slane %v1688, 4
        %v1691 = vor.u32 %v1690, %v1686
        %v1692 = vrot.slane %v1691, 4
        %v1694 = vshll.u32 %v1418, 16
        %v1696 = vrot.slane %v1694, 5
        %v1697 = vsel %vm238, %v1692, %v1696
        %v1699 = vshrl.u32 %v1419, 16
        %v1701 = vrot.slane %v1699, 4
        %v1702 = vshll.u32 %v1419, 16
        %v1704 = vrot.slane %v1702, 5
        %v1705 = vor.u32 %v1701, %v1704
        %v1706 = vrot.slane %v1705, 4
        %v1708 = vshll.u32 %v1420, 16
        %v1710 = vrot.slane %v1708, 5
        %v1711 = vsel %vm238, %v1706, %v1710
        %v1712 = vshrl.u32 %v1420, 16
        %v1714 = vrot.slane %v1712, 4
        %v1715 = vor.u32 %v1714, %v1710
        %v1716 = vrot.slane %v1715, 4
        %v1718 = vshll.u32 %v1421, 16
        %v1720 = vrot.slane %v1718, 5
        %v1721 = vsel %vm238, %v1716, %v1720
        %v1723 = vshrl.u32 %v1422, 16
        %v1725 = vrot.slane %v1723, 4
        %v1726 = vshll.u32 %v1422, 16
        %v1728 = vrot.slane %v1726, 5
        %v1729 = vor.u32 %v1725, %v1728
        %v1730 = vrot.slane %v1729, 4
        %v1732 = vshll.u32 %v1423, 16
        %v1734 = vrot.slane %v1732, 5
        %v1735 = vsel %vm238, %v1730, %v1734
        %v1736 = vshrl.u32 %v1423, 16
        %v1738 = vrot.slane %v1736, 4
        %v1739 = vor.u32 %v1738, %v1734
        %v1740 = vrot.slane %v1739, 4
        %v1742 = vshll.u32 %v1424, 16
        %v1744 = vrot.slane %v1742, 5
        %v1745 = vsel %vm238, %v1740, %v1744
        %v1747 = vshrl.u32 %v1425, 16
        %v1749 = vrot.slane %v1747, 4
        %v1750 = vshll.u32 %v1425, 16
        %v1752 = vrot.slane %v1750, 5
        %v1753 = vor.u32 %v1749, %v1752
        %v1754 = vrot.slane %v1753, 4
        %v1756 = vshll.u32 %v1426, 16
        %v1758 = vrot.slane %v1756, 5
        %v1759 = vsel %vm238, %v1754, %v1758
        %v1760 = vshrl.u32 %v1426, 16
        %v1762 = vrot.slane %v1760, 4
        %v1763 = vor.u32 %v1762, %v1758
        %v1764 = vrot.slane %v1763, 4
        %v1766 = vshll.u32 %v1427, 16
        %v1768 = vrot.slane %v1766, 5
        %v1769 = vsel %vm238, %v1764, %v1768
        %v1771 = vshrl.u32 %v1428, 16
        %v1773 = vrot.slane %v1771, 4
        %v1774 = vshll.u32 %v1428, 16
        %v1776 = vrot.slane %v1774, 5
        %v1777 = vor.u32 %v1773, %v1776
        %v1778 = vrot.slane %v1777, 4
        %v1780 = vshll.u32 %v1429, 16
        %v1782 = vrot.slane %v1780, 5
        %v1783 = vsel %vm238, %v1778, %v1782
        %v1784 = vshrl.u32 %v1429, 16
        %v1786 = vrot.slane %v1784, 4
        %v1787 = vor.u32 %v1786, %v1782
        %v1788 = vrot.slane %v1787, 4
        %v1790 = vshll.u32 %v1430, 16
        %v1792 = vrot.slane %v1790, 5
        %v1793 = vsel %vm238, %v1788, %v1792
        %v1795 = vshrl.u32 %v1431, 16
        %v1797 = vrot.slane %v1795, 4
        %v1798 = vshll.u32 %v1431, 16
        %v1800 = vrot.slane %v1798, 5
        %v1801 = vor.u32 %v1797, %v1800
        %v1802 = vrot.slane %v1801, 4
        %v1804 = vshll.u32 %v1432, 16
        %v1806 = vrot.slane %v1804, 5
        %v1807 = vsel %vm238, %v1802, %v1806
        %v1808 = vshrl.u32 %v1432, 16
        %v1810 = vrot.slane %v1808, 4
        %v1811 = vor.u32 %v1810, %v1806
        %v1812 = vrot.slane %v1811, 4
        %v1814 = vshll.u32 %v1433, 16
        %v1816 = vrot.slane %v1814, 5
        %v1817 = vsel %vm238, %v1812, %v1816
        %v1866 = vrot.slane %v1386, 5
        %v1867 = vrot.slane %v1866, 4
        %v1868 = vrot.slane %v1387, 5
        %v1869 = vsel %vm673, %v1867, %v1868
        %v1870 = vrot.slane %v1868, 4
        %v1871 = vrot.slane %v1388, 5
        %v1872 = vsel %vm673, %v1870, %v1871
        %v1873 = vrot.slane %v1389, 5
        %v1874 = vrot.slane %v1873, 4
        %v1875 = vrot.slane %v1390, 5
        %v1876 = vsel %vm673, %v1874, %v1875
        %v1877 = vrot.slane %v1875, 4
        %v1878 = vrot.slane %v1391, 5
        %v1879 = vsel %vm673, %v1877, %v1878
        %v1880 = vrot.slane %v1392, 5
        %v1881 = vrot.slane %v1880, 4
        %v1882 = vrot.slane %v1393, 5
        %v1883 = vsel %vm673, %v1881, %v1882
        %v1884 = vrot.slane %v1882, 4
        %v1885 = vrot.slane %v1394, 5
        %v1886 = vsel %vm673, %v1884, %v1885
        %v1887 = vrot.slane %v1395, 5
        %v1888 = vrot.slane %v1887, 4
        %v1889 = vrot.slane %v1396, 5
        %v1890 = vsel %vm673, %v1888, %v1889
        %v1891 = vrot.slane %v1889, 4
        %v1892 = vrot.slane %v1397, 5
        %v1893 = vsel %vm673, %v1891, %v1892
        %v1894 = vrot.slane %v1398, 5
        %v1895 = vrot.slane %v1894, 4
        %v1896 = vrot.slane %v1399, 5
        %v1897 = vsel %vm673, %v1895, %v1896
        %v1898 = vrot.slane %v1896, 4
        %v1899 = vrot.slane %v1400, 5
        %v1900 = vsel %vm673, %v1898, %v1899
        %v1901 = vrot.slane %v1401, 5
        %v1902 = vrot.slane %v1901, 4
        %v1903 = vrot.slane %v1402, 5
        %v1904 = vsel %vm673, %v1902, %v1903
        %v1905 = vrot.slane %v1903, 4
        %v1906 = vrot.slane %v1403, 5
        %v1907 = vsel %vm673, %v1905, %v1906
        %v1908 = vrot.slane %v1404, 5
        %v1909 = vrot.slane %v1908, 4
        %v1910 = vrot.slane %v1405, 5
        %v1911 = vsel %vm673, %v1909, %v1910
        %v1912 = vrot.slane %v1910, 4
        %v1913 = vrot.slane %v1406, 5
        %v1914 = vsel %vm673, %v1912, %v1913
        %v1915 = vrot.slane %v1407, 5
        %v1916 = vrot.slane %v1915, 4
        %v1917 = vrot.slane %v1408, 5
        %v1918 = vsel %vm673, %v1916, %v1917
        %v1919 = vrot.slane %v1917, 4
        %v1920 = vrot.slane %v1409, 5
        %v1921 = vsel %vm673, %v1919, %v1920
        %v1922 = vrot.slane %v1410, 5
        %v1923 = vrot.slane %v1922, 4
        %v1924 = vrot.slane %v1411, 5
        %v1925 = vsel %vm673, %v1923, %v1924
        %v1926 = vrot.slane %v1924, 4
        %v1927 = vrot.slane %v1412, 5
        %v1928 = vsel %vm673, %v1926, %v1927
        %v1929 = vrot.slane %v1413, 5
        %v1930 = vrot.slane %v1929, 4
        %v1931 = vrot.slane %v1414, 5
        %v1932 = vsel %vm673, %v1930, %v1931
        %v1933 = vrot.slane %v1931, 4
        %v1934 = vrot.slane %v1415, 5
        %v1935 = vsel %vm673, %v1933, %v1934
        %v1936 = vrot.slane %v1416, 5
        %v1937 = vrot.slane %v1936, 4
        %v1938 = vrot.slane %v1417, 5
        %v1939 = vsel %vm673, %v1937, %v1938
        %v1940 = vrot.slane %v1938, 4
        %v1941 = vrot.slane %v1418, 5
        %v1942 = vsel %vm673, %v1940, %v1941
        %v1943 = vrot.slane %v1419, 5
        %v1944 = vrot.slane %v1943, 4
        %v1945 = vrot.slane %v1420, 5
        %v1946 = vsel %vm673, %v1944, %v1945
        %v1947 = vrot.slane %v1945, 4
        %v1948 = vrot.slane %v1421, 5
        %v1949 = vsel %vm673, %v1947, %v1948
        %v1950 = vrot.slane %v1422, 5
        %v1951 = vrot.slane %v1950, 4
        %v1952 = vrot.slane %v1423, 5
        %v1953 = vsel %vm673, %v1951, %v1952
        %v1954 = vrot.slane %v1952, 4
        %v1955 = vrot.slane %v1424, 5
        %v1956 = vsel %vm673, %v1954, %v1955
        %v1957 = vrot.slane %v1425, 5
        %v1958 = vrot.slane %v1957, 4
        %v1959 = vrot.slane %v1426, 5
        %v1960 = vsel %vm673, %v1958, %v1959
        %v1961 = vrot.slane %v1959, 4
        %v1962 = vrot.slane %v1427, 5
        %v1963 = vsel %vm673, %v1961, %v1962
        %v1964 = vrot.slane %v1428, 5
        %v1965 = vrot.slane %v1964, 4
        %v1966 = vrot.slane %v1429, 5
        %v1967 = vsel %vm673, %v1965, %v1966
        %v1968 = vrot.slane %v1966, 4
        %v1969 = vrot.slane %v1430, 5
        %v1970 = vsel %vm673, %v1968, %v1969
        %v1971 = vrot.slane %v1431, 5
        %v1972 = vrot.slane %v1971, 4
        %v1973 = vrot.slane %v1432, 5
        %v1974 = vsel %vm673, %v1972, %v1973
        %v1975 = vrot.slane %v1973, 4
        %v1976 = vrot.slane %v1433, 5
        %v1977 = vsel %vm673, %v1975, %v1976
        %v1978 = vunpack.c.l.b16 %v188
        %v1979 = vunpack.c.l.b16 %v189
        %v1980 = vunpack.c.l.b16 %v191
        %v1981 = vunpack.c.l.b16 %v192
        %v1982 = vunpack.c.l.b16 %v194
        %v1983 = vunpack.c.l.b16 %v195
        %v1984 = vunpack.c.l.b16 %v197
        %v1985 = vunpack.c.l.b16 %v198
        %v1986 = vunpack.c.l.b16 %v200
        %v1987 = vunpack.c.l.b16 %v201
        %v1988 = vunpack.c.l.b16 %v203
        %v1989 = vunpack.c.l.b16 %v204
        %v1990 = vunpack.c.l.b16 %v206
        %v1991 = vunpack.c.l.b16 %v207
        %v1992 = vunpack.c.l.b16 %v209
        %v1993 = vunpack.c.l.b16 %v210
        %v1994 = vunpack.c.l.b16 %v212
        %v1995 = vunpack.c.l.b16 %v213
        %v1996 = vunpack.c.l.b16 %v215
        %v1997 = vunpack.c.l.b16 %v216
        %v1998 = vunpack.c.l.b16 %v218
        %v1999 = vunpack.c.l.b16 %v219
        %v2000 = vunpack.c.l.b16 %v221
        %v2001 = vunpack.c.l.b16 %v222
        %v2002 = vunpack.c.l.b16 %v224
        %v2003 = vunpack.c.l.b16 %v225
        %v2004 = vunpack.c.l.b16 %v227
        %v2005 = vunpack.c.l.b16 %v228
        %v2006 = vunpack.c.l.b16 %v230
        %v2007 = vunpack.c.l.b16 %v231
        %v2008 = vunpack.c.l.b16 %v233
        %v2009 = vunpack.c.l.b16 %v234
        %v2010 = vpack.c.b16 %v1979, %v1978
        %v2011 = vpack.c.b16 %v1981, %v1980
        %v2012 = vpack.c.b16 %v1983, %v1982
        %v2013 = vpack.c.b16 %v1985, %v1984
        %v2014 = vpack.c.b16 %v1987, %v1986
        %v2015 = vpack.c.b16 %v1989, %v1988
        %v2016 = vpack.c.b16 %v1991, %v1990
        %v2017 = vpack.c.b16 %v1993, %v1992
        %v2018 = vpack.c.b16 %v1995, %v1994
        %v2019 = vpack.c.b16 %v1997, %v1996
        %v2020 = vpack.c.b16 %v1999, %v1998
        %v2021 = vpack.c.b16 %v2001, %v2000
        %v2022 = vpack.c.b16 %v2003, %v2002
        %v2023 = vpack.c.b16 %v2005, %v2004
        %v2024 = vpack.c.b16 %v2007, %v2006
        %v2025 = vpack.c.b16 %v2009, %v2008
        %v2026 = vunpack.c.l.b16 %v252
        %v2027 = vunpack.c.l.b16 %v262
        %v2028 = vunpack.c.l.b16 %v276
        %v2029 = vunpack.c.l.b16 %v286
        %v2030 = vunpack.c.l.b16 %v300
        %v2031 = vunpack.c.l.b16 %v310
        %v2032 = vunpack.c.l.b16 %v324
        %v2033 = vunpack.c.l.b16 %v334
        %v2034 = vunpack.c.l.b16 %v348
        %v2035 = vunpack.c.l.b16 %v358
        %v2036 = vunpack.c.l.b16 %v372
        %v2037 = vunpack.c.l.b16 %v382
        %v2038 = vunpack.c.l.b16 %v396
        %v2039 = vunpack.c.l.b16 %v406
        %v2040 = vunpack.c.l.b16 %v420
        %v2041 = vunpack.c.l.b16 %v430
        %v2042 = vunpack.c.l.b16 %v444
        %v2043 = vunpack.c.l.b16 %v454
        %v2044 = vunpack.c.l.b16 %v468
        %v2045 = vunpack.c.l.b16 %v478
        %v2046 = vunpack.c.l.b16 %v492
        %v2047 = vunpack.c.l.b16 %v502
        %v2048 = vunpack.c.l.b16 %v516
        %v2049 = vunpack.c.l.b16 %v526
        %v2050 = vunpack.c.l.b16 %v540
        %v2051 = vunpack.c.l.b16 %v550
        %v2052 = vunpack.c.l.b16 %v564
        %v2053 = vunpack.c.l.b16 %v574
        %v2054 = vunpack.c.l.b16 %v588
        %v2055 = vunpack.c.l.b16 %v598
        %v2056 = vunpack.c.l.b16 %v612
        %v2057 = vunpack.c.l.b16 %v622
        %v2058 = vpack.c.b16 %v2027, %v2026
        %v2059 = vpack.c.b16 %v2029, %v2028
        %v2060 = vpack.c.b16 %v2031, %v2030
        %v2061 = vpack.c.b16 %v2033, %v2032
        %v2062 = vpack.c.b16 %v2035, %v2034
        %v2063 = vpack.c.b16 %v2037, %v2036
        %v2064 = vpack.c.b16 %v2039, %v2038
        %v2065 = vpack.c.b16 %v2041, %v2040
        %v2066 = vpack.c.b16 %v2043, %v2042
        %v2067 = vpack.c.b16 %v2045, %v2044
        %v2068 = vpack.c.b16 %v2047, %v2046
        %v2069 = vpack.c.b16 %v2049, %v2048
        %v2070 = vpack.c.b16 %v2051, %v2050
        %v2071 = vpack.c.b16 %v2053, %v2052
        %v2072 = vpack.c.b16 %v2055, %v2054
        %v2073 = vpack.c.b16 %v2057, %v2056
        %2074 = vrot.lane.b32.xlu0 %v2058, 4
        %v2075 = vpop.permute.xlu0 %2074
        %2076 = vrot.lane.b32.xlu0 %v2059, 4
        %v2077 = vpop.permute.xlu0 %2076
        %2078 = vrot.lane.b32.xlu0 %v2060, 4
        %v2079 = vpop.permute.xlu0 %2078
        %2080 = vrot.lane.b32.xlu0 %v2061, 4
        %v2081 = vpop.permute.xlu0 %2080
        %2082 = vrot.lane.b32.xlu0 %v2062, 4
        %v2083 = vpop.permute.xlu0 %2082
        %2084 = vrot.lane.b32.xlu0 %v2063, 4
        %v2085 = vpop.permute.xlu0 %2084
        %2086 = vrot.lane.b32.xlu0 %v2064, 4
        %v2087 = vpop.permute.xlu0 %2086
        %2088 = vrot.lane.b32.xlu0 %v2065, 4
        %v2089 = vpop.permute.xlu0 %2088
        %2090 = vrot.lane.b32.xlu0 %v2066, 4
        %v2091 = vpop.permute.xlu0 %2090
        %2092 = vrot.lane.b32.xlu0 %v2067, 4
        %v2093 = vpop.permute.xlu0 %2092
        %2094 = vrot.lane.b32.xlu0 %v2068, 4
        %v2095 = vpop.permute.xlu0 %2094
        %2096 = vrot.lane.b32.xlu0 %v2069, 4
        %v2097 = vpop.permute.xlu0 %2096
        %2098 = vrot.lane.b32.xlu0 %v2070, 4
        %v2099 = vpop.permute.xlu0 %2098
        %2100 = vrot.lane.b32.xlu0 %v2071, 4
        %v2101 = vpop.permute.xlu0 %2100
        %2102 = vrot.lane.b32.xlu0 %v2072, 4
        %v2103 = vpop.permute.xlu0 %2102
        %2104 = vrot.lane.b32.xlu0 %v2073, 4
        %v2105 = vpop.permute.xlu0 %2104
        %v2106 = vunpack.c.l.b16 %v677
        %v2107 = vunpack.c.l.b16 %v680
        %v2108 = vunpack.c.l.b16 %v684
        %v2109 = vunpack.c.l.b16 %v687
        %v2110 = vunpack.c.l.b16 %v691
        %v2111 = vunpack.c.l.b16 %v694
        %v2112 = vunpack.c.l.b16 %v698
        %v2113 = vunpack.c.l.b16 %v701
        %v2114 = vunpack.c.l.b16 %v705
        %v2115 = vunpack.c.l.b16 %v708
        %v2116 = vunpack.c.l.b16 %v712
        %v2117 = vunpack.c.l.b16 %v715
        %v2118 = vunpack.c.l.b16 %v719
        %v2119 = vunpack.c.l.b16 %v722
        %v2120 = vunpack.c.l.b16 %v726
        %v2121 = vunpack.c.l.b16 %v729
        %v2122 = vunpack.c.l.b16 %v733
        %v2123 = vunpack.c.l.b16 %v736
        %v2124 = vunpack.c.l.b16 %v740
        %v2125 = vunpack.c.l.b16 %v743
        %v2126 = vunpack.c.l.b16 %v747
        %v2127 = vunpack.c.l.b16 %v750
        %v2128 = vunpack.c.l.b16 %v754
        %v2129 = vunpack.c.l.b16 %v757
        %v2130 = vunpack.c.l.b16 %v761
        %v2131 = vunpack.c.l.b16 %v764
        %v2132 = vunpack.c.l.b16 %v768
        %v2133 = vunpack.c.l.b16 %v771
        %v2134 = vunpack.c.l.b16 %v775
        %v2135 = vunpack.c.l.b16 %v778
        %v2136 = vunpack.c.l.b16 %v782
        %v2137 = vunpack.c.l.b16 %v785
        %v2138 = vpack.c.b16 %v2107, %v2106
        %v2139 = vpack.c.b16 %v2109, %v2108
        %v2140 = vpack.c.b16 %v2111, %v2110
        %v2141 = vpack.c.b16 %v2113, %v2112
        %v2142 = vpack.c.b16 %v2115, %v2114
        %v2143 = vpack.c.b16 %v2117, %v2116
        %v2144 = vpack.c.b16 %v2119, %v2118
        %v2145 = vpack.c.b16 %v2121, %v2120
        %v2146 = vpack.c.b16 %v2123, %v2122
        %v2147 = vpack.c.b16 %v2125, %v2124
        %v2148 = vpack.c.b16 %v2127, %v2126
        %v2149 = vpack.c.b16 %v2129, %v2128
        %v2150 = vpack.c.b16 %v2131, %v2130
        %v2151 = vpack.c.b16 %v2133, %v2132
        %v2152 = vpack.c.b16 %v2135, %v2134
        %v2153 = vpack.c.b16 %v2137, %v2136
        %2154 = vrot.lane.b32.xlu0 %v2138, 8
        %v2155 = vpop.permute.xlu0 %2154
        %2156 = vrot.lane.b32.xlu0 %v2139, 8
        %v2157 = vpop.permute.xlu0 %2156
        %2158 = vrot.lane.b32.xlu0 %v2140, 8
        %v2159 = vpop.permute.xlu0 %2158
        %2160 = vrot.lane.b32.xlu0 %v2141, 8
        %v2161 = vpop.permute.xlu0 %2160
        %2162 = vrot.lane.b32.xlu0 %v2142, 8
        %v2163 = vpop.permute.xlu0 %2162
        %2164 = vrot.lane.b32.xlu0 %v2143, 8
        %v2165 = vpop.permute.xlu0 %2164
        %2166 = vrot.lane.b32.xlu0 %v2144, 8
        %v2167 = vpop.permute.xlu0 %2166
        %2168 = vrot.lane.b32.xlu0 %v2145, 8
        %v2169 = vpop.permute.xlu0 %2168
        %2170 = vrot.lane.b32.xlu0 %v2146, 8
        %v2171 = vpop.permute.xlu0 %2170
        %2172 = vrot.lane.b32.xlu0 %v2147, 8
        %v2173 = vpop.permute.xlu0 %2172
        %2174 = vrot.lane.b32.xlu0 %v2148, 8
        %v2175 = vpop.permute.xlu0 %2174
        %2176 = vrot.lane.b32.xlu0 %v2149, 8
        %v2177 = vpop.permute.xlu0 %2176
        %2178 = vrot.lane.b32.xlu0 %v2150, 8
        %v2179 = vpop.permute.xlu0 %2178
        %2180 = vrot.lane.b32.xlu0 %v2151, 8
        %v2181 = vpop.permute.xlu0 %2180
        %2182 = vrot.lane.b32.xlu0 %v2152, 8
        %v2183 = vpop.permute.xlu0 %2182
        %2184 = vrot.lane.b32.xlu0 %v2153, 8
        %v2185 = vpop.permute.xlu0 %2184
        %v2186 = vunpack.c.l.b16 %v790
        %v2187 = vunpack.c.l.b16 %v791
        %v2188 = vunpack.c.l.b16 %v793
        %v2189 = vunpack.c.l.b16 %v794
        %v2190 = vunpack.c.l.b16 %v796
        %v2191 = vunpack.c.l.b16 %v797
        %v2192 = vunpack.c.l.b16 %v799
        %v2193 = vunpack.c.l.b16 %v800
        %v2194 = vunpack.c.l.b16 %v802
        %v2195 = vunpack.c.l.b16 %v803
        %v2196 = vunpack.c.l.b16 %v805
        %v2197 = vunpack.c.l.b16 %v806
        %v2198 = vunpack.c.l.b16 %v808
        %v2199 = vunpack.c.l.b16 %v809
        %v2200 = vunpack.c.l.b16 %v811
        %v2201 = vunpack.c.l.b16 %v812
        %v2202 = vunpack.c.l.b16 %v814
        %v2203 = vunpack.c.l.b16 %v815
        %v2204 = vunpack.c.l.b16 %v817
        %v2205 = vunpack.c.l.b16 %v818
        %v2206 = vunpack.c.l.b16 %v820
        %v2207 = vunpack.c.l.b16 %v821
        %v2208 = vunpack.c.l.b16 %v823
        %v2209 = vunpack.c.l.b16 %v824
        %v2210 = vunpack.c.l.b16 %v826
        %v2211 = vunpack.c.l.b16 %v827
        %v2212 = vunpack.c.l.b16 %v829
        %v2213 = vunpack.c.l.b16 %v830
        %v2214 = vunpack.c.l.b16 %v832
        %v2215 = vunpack.c.l.b16 %v833
        %v2216 = vunpack.c.l.b16 %v835
        %v2217 = vunpack.c.l.b16 %v836
        %v2218 = vpack.c.b16 %v2187, %v2186
        %v2219 = vpack.c.b16 %v2189, %v2188
        %v2220 = vpack.c.b16 %v2191, %v2190
        %v2221 = vpack.c.b16 %v2193, %v2192
        %v2222 = vpack.c.b16 %v2195, %v2194
        %v2223 = vpack.c.b16 %v2197, %v2196
        %v2224 = vpack.c.b16 %v2199, %v2198
        %v2225 = vpack.c.b16 %v2201, %v2200
        %v2226 = vpack.c.b16 %v2203, %v2202
        %v2227 = vpack.c.b16 %v2205, %v2204
        %v2228 = vpack.c.b16 %v2207, %v2206
        %v2229 = vpack.c.b16 %v2209, %v2208
        %v2230 = vpack.c.b16 %v2211, %v2210
        %v2231 = vpack.c.b16 %v2213, %v2212
        %v2232 = vpack.c.b16 %v2215, %v2214
        %v2233 = vpack.c.b16 %v2217, %v2216
        %2234 = vrot.lane.b32.xlu0 %v2218, 12
        %v2235 = vpop.permute.xlu0 %2234
        %2236 = vrot.lane.b32.xlu0 %v2219, 12
        %v2237 = vpop.permute.xlu0 %2236
        %2238 = vrot.lane.b32.xlu0 %v2220, 12
        %v2239 = vpop.permute.xlu0 %2238
        %2240 = vrot.lane.b32.xlu0 %v2221, 12
        %v2241 = vpop.permute.xlu0 %2240
        %2242 = vrot.lane.b32.xlu0 %v2222, 12
        %v2243 = vpop.permute.xlu0 %2242
        %2244 = vrot.lane.b32.xlu0 %v2223, 12
        %v2245 = vpop.permute.xlu0 %2244
        %2246 = vrot.lane.b32.xlu0 %v2224, 12
        %v2247 = vpop.permute.xlu0 %2246
        %2248 = vrot.lane.b32.xlu0 %v2225, 12
        %v2249 = vpop.permute.xlu0 %2248
        %2250 = vrot.lane.b32.xlu0 %v2226, 12
        %v2251 = vpop.permute.xlu0 %2250
        %2252 = vrot.lane.b32.xlu0 %v2227, 12
        %v2253 = vpop.permute.xlu0 %2252
        %2254 = vrot.lane.b32.xlu0 %v2228, 12
        %v2255 = vpop.permute.xlu0 %2254
        %2256 = vrot.lane.b32.xlu0 %v2229, 12
        %v2257 = vpop.permute.xlu0 %2256
        %2258 = vrot.lane.b32.xlu0 %v2230, 12
        %v2259 = vpop.permute.xlu0 %2258
        %2260 = vrot.lane.b32.xlu0 %v2231, 12
        %v2261 = vpop.permute.xlu0 %2260
        %2262 = vrot.lane.b32.xlu0 %v2232, 12
        %v2263 = vpop.permute.xlu0 %2262
        %2264 = vrot.lane.b32.xlu0 %v2233, 12
        %v2265 = vpop.permute.xlu0 %2264
        %v2266 = vunpack.c.l.b16 %v851
        %v2267 = vunpack.c.l.b16 %v861
        %v2268 = vunpack.c.l.b16 %v875
        %v2269 = vunpack.c.l.b16 %v885
        %v2270 = vunpack.c.l.b16 %v899
        %v2271 = vunpack.c.l.b16 %v909
        %v2272 = vunpack.c.l.b16 %v923
        %v2273 = vunpack.c.l.b16 %v933
        %v2274 = vunpack.c.l.b16 %v947
        %v2275 = vunpack.c.l.b16 %v957
        %v2276 = vunpack.c.l.b16 %v971
        %v2277 = vunpack.c.l.b16 %v981
        %v2278 = vunpack.c.l.b16 %v995
        %v2279 = vunpack.c.l.b16 %v1005
        %v2280 = vunpack.c.l.b16 %v1019
        %v2281 = vunpack.c.l.b16 %v1029
        %v2282 = vunpack.c.l.b16 %v1043
        %v2283 = vunpack.c.l.b16 %v1053
        %v2284 = vunpack.c.l.b16 %v1067
        %v2285 = vunpack.c.l.b16 %v1077
        %v2286 = vunpack.c.l.b16 %v1091
        %v2287 = vunpack.c.l.b16 %v1101
        %v2288 = vunpack.c.l.b16 %v1115
        %v2289 = vunpack.c.l.b16 %v1125
        %v2290 = vunpack.c.l.b16 %v1139
        %v2291 = vunpack.c.l.b16 %v1149
        %v2292 = vunpack.c.l.b16 %v1163
        %v2293 = vunpack.c.l.b16 %v1173
        %v2294 = vunpack.c.l.b16 %v1187
        %v2295 = vunpack.c.l.b16 %v1197
        %v2296 = vunpack.c.l.b16 %v1211
        %v2297 = vunpack.c.l.b16 %v1221
        %v2298 = vpack.c.b16 %v2267, %v2266
        %v2299 = vpack.c.b16 %v2269, %v2268
        %v2300 = vpack.c.b16 %v2271, %v2270
        %v2301 = vpack.c.b16 %v2273, %v2272
        %v2302 = vpack.c.b16 %v2275, %v2274
        %v2303 = vpack.c.b16 %v2277, %v2276
        %v2304 = vpack.c.b16 %v2279, %v2278
        %v2305 = vpack.c.b16 %v2281, %v2280
        %v2306 = vpack.c.b16 %v2283, %v2282
        %v2307 = vpack.c.b16 %v2285, %v2284
        %v2308 = vpack.c.b16 %v2287, %v2286
        %v2309 = vpack.c.b16 %v2289, %v2288
        %v2310 = vpack.c.b16 %v2291, %v2290
        %v2311 = vpack.c.b16 %v2293, %v2292
        %v2312 = vpack.c.b16 %v2295, %v2294
        %v2313 = vpack.c.b16 %v2297, %v2296
        %2314 = vrot.lane.b32.xlu0 %v2298, 16
        %v2315 = vpop.permute.xlu0 %2314
        %2316 = vrot.lane.b32.xlu0 %v2299, 16
        %v2317 = vpop.permute.xlu0 %2316
        %2318 = vrot.lane.b32.xlu0 %v2300, 16
        %v2319 = vpop.permute.xlu0 %2318
        %2320 = vrot.lane.b32.xlu0 %v2301, 16
        %v2321 = vpop.permute.xlu0 %2320
        %2322 = vrot.lane.b32.xlu0 %v2302, 16
        %v2323 = vpop.permute.xlu0 %2322
        %2324 = vrot.lane.b32.xlu0 %v2303, 16
        %v2325 = vpop.permute.xlu0 %2324
        %2326 = vrot.lane.b32.xlu0 %v2304, 16
        %v2327 = vpop.permute.xlu0 %2326
        %2328 = vrot.lane.b32.xlu0 %v2305, 16
        %v2329 = vpop.permute.xlu0 %2328
        %2330 = vrot.lane.b32.xlu0 %v2306, 16
        %v2331 = vpop.permute.xlu0 %2330
        %2332 = vrot.lane.b32.xlu0 %v2307, 16
        %v2333 = vpop.permute.xlu0 %2332
        %2334 = vrot.lane.b32.xlu0 %v2308, 16
        %v2335 = vpop.permute.xlu0 %2334
        %2336 = vrot.lane.b32.xlu0 %v2309, 16
        %v2337 = vpop.permute.xlu0 %2336
        %2338 = vrot.lane.b32.xlu0 %v2310, 16
        %v2339 = vpop.permute.xlu0 %2338
        %2340 = vrot.lane.b32.xlu0 %v2311, 16
        %v2341 = vpop.permute.xlu0 %2340
        %2342 = vrot.lane.b32.xlu0 %v2312, 16
        %v2343 = vpop.permute.xlu0 %2342
        %2344 = vrot.lane.b32.xlu0 %v2313, 16
        %v2345 = vpop.permute.xlu0 %2344
        %v2346 = vunpack.c.l.b16 %v1273
        %v2347 = vunpack.c.l.b16 %v1276
        %v2348 = vunpack.c.l.b16 %v1280
        %v2349 = vunpack.c.l.b16 %v1283
        %v2350 = vunpack.c.l.b16 %v1287
        %v2351 = vunpack.c.l.b16 %v1290
        %v2352 = vunpack.c.l.b16 %v1294
        %v2353 = vunpack.c.l.b16 %v1297
        %v2354 = vunpack.c.l.b16 %v1301
        %v2355 = vunpack.c.l.b16 %v1304
        %v2356 = vunpack.c.l.b16 %v1308
        %v2357 = vunpack.c.l.b16 %v1311
        %v2358 = vunpack.c.l.b16 %v1315
        %v2359 = vunpack.c.l.b16 %v1318
        %v2360 = vunpack.c.l.b16 %v1322
        %v2361 = vunpack.c.l.b16 %v1325
        %v2362 = vunpack.c.l.b16 %v1329
        %v2363 = vunpack.c.l.b16 %v1332
        %v2364 = vunpack.c.l.b16 %v1336
        %v2365 = vunpack.c.l.b16 %v1339
        %v2366 = vunpack.c.l.b16 %v1343
        %v2367 = vunpack.c.l.b16 %v1346
        %v2368 = vunpack.c.l.b16 %v1350
        %v2369 = vunpack.c.l.b16 %v1353
        %v2370 = vunpack.c.l.b16 %v1357
        %v2371 = vunpack.c.l.b16 %v1360
        %v2372 = vunpack.c.l.b16 %v1364
        %v2373 = vunpack.c.l.b16 %v1367
        %v2374 = vunpack.c.l.b16 %v1371
        %v2375 = vunpack.c.l.b16 %v1374
        %v2376 = vunpack.c.l.b16 %v1378
        %v2377 = vunpack.c.l.b16 %v1381
        %v2378 = vpack.c.b16 %v2347, %v2346
        %v2379 = vpack.c.b16 %v2349, %v2348
        %v2380 = vpack.c.b16 %v2351, %v2350
        %v2381 = vpack.c.b16 %v2353, %v2352
        %v2382 = vpack.c.b16 %v2355, %v2354
        %v2383 = vpack.c.b16 %v2357, %v2356
        %v2384 = vpack.c.b16 %v2359, %v2358
        %v2385 = vpack.c.b16 %v2361, %v2360
        %v2386 = vpack.c.b16 %v2363, %v2362
        %v2387 = vpack.c.b16 %v2365, %v2364
        %v2388 = vpack.c.b16 %v2367, %v2366
        %v2389 = vpack.c.b16 %v2369, %v2368
        %v2390 = vpack.c.b16 %v2371, %v2370
        %v2391 = vpack.c.b16 %v2373, %v2372
        %v2392 = vpack.c.b16 %v2375, %v2374
        %v2393 = vpack.c.b16 %v2377, %v2376
        %2394 = vrot.lane.b32.xlu0 %v2378, 20
        %v2395 = vpop.permute.xlu0 %2394
        %2396 = vrot.lane.b32.xlu0 %v2379, 20
        %v2397 = vpop.permute.xlu0 %2396
        %2398 = vrot.lane.b32.xlu0 %v2380, 20
        %v2399 = vpop.permute.xlu0 %2398
        %2400 = vrot.lane.b32.xlu0 %v2381, 20
        %v2401 = vpop.permute.xlu0 %2400
        %2402 = vrot.lane.b32.xlu0 %v2382, 20
        %v2403 = vpop.permute.xlu0 %2402
        %2404 = vrot.lane.b32.xlu0 %v2383, 20
        %v2405 = vpop.permute.xlu0 %2404
        %2406 = vrot.lane.b32.xlu0 %v2384, 20
        %v2407 = vpop.permute.xlu0 %2406
        %2408 = vrot.lane.b32.xlu0 %v2385, 20
        %v2409 = vpop.permute.xlu0 %2408
        %2410 = vrot.lane.b32.xlu0 %v2386, 20
        %v2411 = vpop.permute.xlu0 %2410
        %2412 = vrot.lane.b32.xlu0 %v2387, 20
        %v2413 = vpop.permute.xlu0 %2412
        %2414 = vrot.lane.b32.xlu0 %v2388, 20
        %v2415 = vpop.permute.xlu0 %2414
        %2416 = vrot.lane.b32.xlu0 %v2389, 20
        %v2417 = vpop.permute.xlu0 %2416
        %2418 = vrot.lane.b32.xlu0 %v2390, 20
        %v2419 = vpop.permute.xlu0 %2418
        %2420 = vrot.lane.b32.xlu0 %v2391, 20
        %v2421 = vpop.permute.xlu0 %2420
        %2422 = vrot.lane.b32.xlu0 %v2392, 20
        %v2423 = vpop.permute.xlu0 %2422
        %2424 = vrot.lane.b32.xlu0 %v2393, 20
        %v2425 = vpop.permute.xlu0 %2424
        %v2426 = vunpack.c.l.b16 %v1386
        %v2427 = vunpack.c.l.b16 %v1387
        %v2428 = vunpack.c.l.b16 %v1389
        %v2429 = vunpack.c.l.b16 %v1390
        %v2430 = vunpack.c.l.b16 %v1392
        %v2431 = vunpack.c.l.b16 %v1393
        %v2432 = vunpack.c.l.b16 %v1395
        %v2433 = vunpack.c.l.b16 %v1396
        %v2434 = vunpack.c.l.b16 %v1398
        %v2435 = vunpack.c.l.b16 %v1399
        %v2436 = vunpack.c.l.b16 %v1401
        %v2437 = vunpack.c.l.b16 %v1402
        %v2438 = vunpack.c.l.b16 %v1404
        %v2439 = vunpack.c.l.b16 %v1405
        %v2440 = vunpack.c.l.b16 %v1407
        %v2441 = vunpack.c.l.b16 %v1408
        %v2442 = vunpack.c.l.b16 %v1410
        %v2443 = vunpack.c.l.b16 %v1411
        %v2444 = vunpack.c.l.b16 %v1413
        %v2445 = vunpack.c.l.b16 %v1414
        %v2446 = vunpack.c.l.b16 %v1416
        %v2447 = vunpack.c.l.b16 %v1417
        %v2448 = vunpack.c.l.b16 %v1419
        %v2449 = vunpack.c.l.b16 %v1420
        %v2450 = vunpack.c.l.b16 %v1422
        %v2451 = vunpack.c.l.b16 %v1423
        %v2452 = vunpack.c.l.b16 %v1425
        %v2453 = vunpack.c.l.b16 %v1426
        %v2454 = vunpack.c.l.b16 %v1428
        %v2455 = vunpack.c.l.b16 %v1429
        %v2456 = vunpack.c.l.b16 %v1431
        %v2457 = vunpack.c.l.b16 %v1432
        %v2458 = vpack.c.b16 %v2427, %v2426
        %v2459 = vpack.c.b16 %v2429, %v2428
        %v2460 = vpack.c.b16 %v2431, %v2430
        %v2461 = vpack.c.b16 %v2433, %v2432
        %v2462 = vpack.c.b16 %v2435, %v2434
        %v2463 = vpack.c.b16 %v2437, %v2436
        %v2464 = vpack.c.b16 %v2439, %v2438
        %v2465 = vpack.c.b16 %v2441, %v2440
        %v2466 = vpack.c.b16 %v2443, %v2442
        %v2467 = vpack.c.b16 %v2445, %v2444
        %v2468 = vpack.c.b16 %v2447, %v2446
        %v2469 = vpack.c.b16 %v2449, %v2448
        %v2470 = vpack.c.b16 %v2451, %v2450
        %v2471 = vpack.c.b16 %v2453, %v2452
        %v2472 = vpack.c.b16 %v2455, %v2454
        %v2473 = vpack.c.b16 %v2457, %v2456
        %2474 = vrot.lane.b32.xlu0 %v2458, 24
        %v2475 = vpop.permute.xlu0 %2474
        %2476 = vrot.lane.b32.xlu0 %v2459, 24
        %v2477 = vpop.permute.xlu0 %2476
        %2478 = vrot.lane.b32.xlu0 %v2460, 24
        %v2479 = vpop.permute.xlu0 %2478
        %2480 = vrot.lane.b32.xlu0 %v2461, 24
        %v2481 = vpop.permute.xlu0 %2480
        %2482 = vrot.lane.b32.xlu0 %v2462, 24
        %v2483 = vpop.permute.xlu0 %2482
        %2484 = vrot.lane.b32.xlu0 %v2463, 24
        %v2485 = vpop.permute.xlu0 %2484
        %2486 = vrot.lane.b32.xlu0 %v2464, 24
        %v2487 = vpop.permute.xlu0 %2486
        %2488 = vrot.lane.b32.xlu0 %v2465, 24
        %v2489 = vpop.permute.xlu0 %2488
        %2490 = vrot.lane.b32.xlu0 %v2466, 24
        %v2491 = vpop.permute.xlu0 %2490
        %2492 = vrot.lane.b32.xlu0 %v2467, 24
        %v2493 = vpop.permute.xlu0 %2492
        %2494 = vrot.lane.b32.xlu0 %v2468, 24
        %v2495 = vpop.permute.xlu0 %2494
        %2496 = vrot.lane.b32.xlu0 %v2469, 24
        %v2497 = vpop.permute.xlu0 %2496
        %2498 = vrot.lane.b32.xlu0 %v2470, 24
        %v2499 = vpop.permute.xlu0 %2498
        %2500 = vrot.lane.b32.xlu0 %v2471, 24
        %v2501 = vpop.permute.xlu0 %2500
        %2502 = vrot.lane.b32.xlu0 %v2472, 24
        %v2503 = vpop.permute.xlu0 %2502
        %2504 = vrot.lane.b32.xlu0 %v2473, 24
        %v2505 = vpop.permute.xlu0 %2504
        %v2506 = vunpack.c.l.b16 %v1447
        %v2507 = vunpack.c.l.b16 %v1457
        %v2508 = vunpack.c.l.b16 %v1471
        %v2509 = vunpack.c.l.b16 %v1481
        %v2510 = vunpack.c.l.b16 %v1495
        %v2511 = vunpack.c.l.b16 %v1505
        %v2512 = vunpack.c.l.b16 %v1519
        %v2513 = vunpack.c.l.b16 %v1529
        %v2514 = vunpack.c.l.b16 %v1543
        %v2515 = vunpack.c.l.b16 %v1553
        %v2516 = vunpack.c.l.b16 %v1567
        %v2517 = vunpack.c.l.b16 %v1577
        %v2518 = vunpack.c.l.b16 %v1591
        %v2519 = vunpack.c.l.b16 %v1601
        %v2520 = vunpack.c.l.b16 %v1615
        %v2521 = vunpack.c.l.b16 %v1625
        %v2522 = vunpack.c.l.b16 %v1639
        %v2523 = vunpack.c.l.b16 %v1649
        %v2524 = vunpack.c.l.b16 %v1663
        %v2525 = vunpack.c.l.b16 %v1673
        %v2526 = vunpack.c.l.b16 %v1687
        %v2527 = vunpack.c.l.b16 %v1697
        %v2528 = vunpack.c.l.b16 %v1711
        %v2529 = vunpack.c.l.b16 %v1721
        %v2530 = vunpack.c.l.b16 %v1735
        %v2531 = vunpack.c.l.b16 %v1745
        %v2532 = vunpack.c.l.b16 %v1759
        %v2533 = vunpack.c.l.b16 %v1769
        %v2534 = vunpack.c.l.b16 %v1783
        %v2535 = vunpack.c.l.b16 %v1793
        %v2536 = vunpack.c.l.b16 %v1807
        %v2537 = vunpack.c.l.b16 %v1817
        %v2538 = vpack.c.b16 %v2507, %v2506
        %v2539 = vpack.c.b16 %v2509, %v2508
        %v2540 = vpack.c.b16 %v2511, %v2510
        %v2541 = vpack.c.b16 %v2513, %v2512
        %v2542 = vpack.c.b16 %v2515, %v2514
        %v2543 = vpack.c.b16 %v2517, %v2516
        %v2544 = vpack.c.b16 %v2519, %v2518
        %v2545 = vpack.c.b16 %v2521, %v2520
        %v2546 = vpack.c.b16 %v2523, %v2522
        %v2547 = vpack.c.b16 %v2525, %v2524
        %v2548 = vpack.c.b16 %v2527, %v2526
        %v2549 = vpack.c.b16 %v2529, %v2528
        %v2550 = vpack.c.b16 %v2531, %v2530
        %v2551 = vpack.c.b16 %v2533, %v2532
        %v2552 = vpack.c.b16 %v2535, %v2534
        %v2553 = vpack.c.b16 %v2537, %v2536
        %2554 = vrot.lane.b32.xlu0 %v2538, 28
        %v2555 = vpop.permute.xlu0 %2554
        %2556 = vrot.lane.b32.xlu0 %v2539, 28
        %v2557 = vpop.permute.xlu0 %2556
        %2558 = vrot.lane.b32.xlu0 %v2540, 28
        %v2559 = vpop.permute.xlu0 %2558
        %2560 = vrot.lane.b32.xlu0 %v2541, 28
        %v2561 = vpop.permute.xlu0 %2560
        %2562 = vrot.lane.b32.xlu0 %v2542, 28
        %v2563 = vpop.permute.xlu0 %2562
        %2564 = vrot.lane.b32.xlu0 %v2543, 28
        %v2565 = vpop.permute.xlu0 %2564
        %2566 = vrot.lane.b32.xlu0 %v2544, 28
        %v2567 = vpop.permute.xlu0 %2566
        %2568 = vrot.lane.b32.xlu0 %v2545, 28
        %v2569 = vpop.permute.xlu0 %2568
        %2570 = vrot.lane.b32.xlu0 %v2546, 28
        %v2571 = vpop.permute.xlu0 %2570
        %2572 = vrot.lane.b32.xlu0 %v2547, 28
        %v2573 = vpop.permute.xlu0 %2572
        %2574 = vrot.lane.b32.xlu0 %v2548, 28
        %v2575 = vpop.permute.xlu0 %2574
        %2576 = vrot.lane.b32.xlu0 %v2549, 28
        %v2577 = vpop.permute.xlu0 %2576
        %2578 = vrot.lane.b32.xlu0 %v2550, 28
        %v2579 = vpop.permute.xlu0 %2578
        %2580 = vrot.lane.b32.xlu0 %v2551, 28
        %v2581 = vpop.permute.xlu0 %2580
        %2582 = vrot.lane.b32.xlu0 %v2552, 28
        %v2583 = vpop.permute.xlu0 %2582
        %2584 = vrot.lane.b32.xlu0 %v2553, 28
        %v2585 = vpop.permute.xlu0 %2584
        %v2586 = vunpack.c.l.b16 %v1869
        %v2587 = vunpack.c.l.b16 %v1872
        %v2588 = vunpack.c.l.b16 %v1876
        %v2589 = vunpack.c.l.b16 %v1879
        %v2590 = vunpack.c.l.b16 %v1883
        %v2591 = vunpack.c.l.b16 %v1886
        %v2592 = vunpack.c.l.b16 %v1890
        %v2593 = vunpack.c.l.b16 %v1893
        %v2594 = vunpack.c.l.b16 %v1897
        %v2595 = vunpack.c.l.b16 %v1900
        %v2596 = vunpack.c.l.b16 %v1904
        %v2597 = vunpack.c.l.b16 %v1907
        %v2598 = vunpack.c.l.b16 %v1911
        %v2599 = vunpack.c.l.b16 %v1914
        %v2600 = vunpack.c.l.b16 %v1918
        %v2601 = vunpack.c.l.b16 %v1921
        %v2602 = vunpack.c.l.b16 %v1925
        %v2603 = vunpack.c.l.b16 %v1928
        %v2604 = vunpack.c.l.b16 %v1932
        %v2605 = vunpack.c.l.b16 %v1935
        %v2606 = vunpack.c.l.b16 %v1939
        %v2607 = vunpack.c.l.b16 %v1942
        %v2608 = vunpack.c.l.b16 %v1946
        %v2609 = vunpack.c.l.b16 %v1949
        %v2610 = vunpack.c.l.b16 %v1953
        %v2611 = vunpack.c.l.b16 %v1956
        %v2612 = vunpack.c.l.b16 %v1960
        %v2613 = vunpack.c.l.b16 %v1963
        %v2614 = vunpack.c.l.b16 %v1967
        %v2615 = vunpack.c.l.b16 %v1970
        %v2616 = vunpack.c.l.b16 %v1974
        %v2617 = vunpack.c.l.b16 %v1977
        %v2618 = vpack.c.b16 %v2587, %v2586
        %v2619 = vpack.c.b16 %v2589, %v2588
        %v2620 = vpack.c.b16 %v2591, %v2590
        %v2621 = vpack.c.b16 %v2593, %v2592
        %v2622 = vpack.c.b16 %v2595, %v2594
        %v2623 = vpack.c.b16 %v2597, %v2596
        %v2624 = vpack.c.b16 %v2599, %v2598
        %v2625 = vpack.c.b16 %v2601, %v2600
        %v2626 = vpack.c.b16 %v2603, %v2602
        %v2627 = vpack.c.b16 %v2605, %v2604
        %v2628 = vpack.c.b16 %v2607, %v2606
        %v2629 = vpack.c.b16 %v2609, %v2608
        %v2630 = vpack.c.b16 %v2611, %v2610
        %v2631 = vpack.c.b16 %v2613, %v2612
        %v2632 = vpack.c.b16 %v2615, %v2614
        %v2633 = vpack.c.b16 %v2617, %v2616
        %2634 = vrot.lane.b32.xlu0 %v2618, 32
        %v2635 = vpop.permute.xlu0 %2634
        %2636 = vrot.lane.b32.xlu0 %v2619, 32
        %v2637 = vpop.permute.xlu0 %2636
        %2638 = vrot.lane.b32.xlu0 %v2620, 32
        %v2639 = vpop.permute.xlu0 %2638
        %2640 = vrot.lane.b32.xlu0 %v2621, 32
        %v2641 = vpop.permute.xlu0 %2640
        %2642 = vrot.lane.b32.xlu0 %v2622, 32
        %v2643 = vpop.permute.xlu0 %2642
        %2644 = vrot.lane.b32.xlu0 %v2623, 32
        %v2645 = vpop.permute.xlu0 %2644
        %2646 = vrot.lane.b32.xlu0 %v2624, 32
        %v2647 = vpop.permute.xlu0 %2646
        %2648 = vrot.lane.b32.xlu0 %v2625, 32
        %v2649 = vpop.permute.xlu0 %2648
        %2650 = vrot.lane.b32.xlu0 %v2626, 32
        %v2651 = vpop.permute.xlu0 %2650
        %2652 = vrot.lane.b32.xlu0 %v2627, 32
        %v2653 = vpop.permute.xlu0 %2652
        %2654 = vrot.lane.b32.xlu0 %v2628, 32
        %v2655 = vpop.permute.xlu0 %2654
        %2656 = vrot.lane.b32.xlu0 %v2629, 32
        %v2657 = vpop.permute.xlu0 %2656
        %2658 = vrot.lane.b32.xlu0 %v2630, 32
        %v2659 = vpop.permute.xlu0 %2658
        %2660 = vrot.lane.b32.xlu0 %v2631, 32
        %v2661 = vpop.permute.xlu0 %2660
        %2662 = vrot.lane.b32.xlu0 %v2632, 32
        %v2663 = vpop.permute.xlu0 %2662
        %2664 = vrot.lane.b32.xlu0 %v2633, 32
        %v2665 = vpop.permute.xlu0 %2664
        %vm2666 = vcmask 31744
        %v2669 = vsel %vm2666, %v2010, %v2075
        %v2672 = vsel %vm2666, %v2011, %v2077
        %v2675 = vsel %vm2666, %v2012, %v2079
        %v2678 = vsel %vm2666, %v2013, %v2081
        %v2681 = vsel %vm2666, %v2014, %v2083
        %v2684 = vsel %vm2666, %v2015, %v2085
        %v2687 = vsel %vm2666, %v2016, %v2087
        %v2690 = vsel %vm2666, %v2017, %v2089
        %v2693 = vsel %vm2666, %v2018, %v2091
        %v2696 = vsel %vm2666, %v2019, %v2093
        %v2699 = vsel %vm2666, %v2020, %v2095
        %v2702 = vsel %vm2666, %v2021, %v2097
        %v2705 = vsel %vm2666, %v2022, %v2099
        %v2708 = vsel %vm2666, %v2023, %v2101
        %v2711 = vsel %vm2666, %v2024, %v2103
        %v2714 = vsel %vm2666, %v2025, %v2105
        %vm2715 = vcmask 64512
        %v2717 = vsel %vm2715, %v2669, %v2155
        %v2719 = vsel %vm2715, %v2672, %v2157
        %v2721 = vsel %vm2715, %v2675, %v2159
        %v2723 = vsel %vm2715, %v2678, %v2161
        %v2725 = vsel %vm2715, %v2681, %v2163
        %v2727 = vsel %vm2715, %v2684, %v2165
        %v2729 = vsel %vm2715, %v2687, %v2167
        %v2731 = vsel %vm2715, %v2690, %v2169
        %v2733 = vsel %vm2715, %v2693, %v2171
        %v2735 = vsel %vm2715, %v2696, %v2173
        %v2737 = vsel %vm2715, %v2699, %v2175
        %v2739 = vsel %vm2715, %v2702, %v2177
        %v2741 = vsel %vm2715, %v2705, %v2179
        %v2743 = vsel %vm2715, %v2708, %v2181
        %v2745 = vsel %vm2715, %v2711, %v2183
        %v2747 = vsel %vm2715, %v2714, %v2185
        %vm2748 = vcmask 97280
        %v2750 = vsel %vm2748, %v2717, %v2235
        %v2752 = vsel %vm2748, %v2719, %v2237
        %v2754 = vsel %vm2748, %v2721, %v2239
        %v2756 = vsel %vm2748, %v2723, %v2241
        %v2758 = vsel %vm2748, %v2725, %v2243
        %v2760 = vsel %vm2748, %v2727, %v2245
        %v2762 = vsel %vm2748, %v2729, %v2247
        %v2764 = vsel %vm2748, %v2731, %v2249
        %v2766 = vsel %vm2748, %v2733, %v2251
        %v2768 = vsel %vm2748, %v2735, %v2253
        %v2770 = vsel %vm2748, %v2737, %v2255
        %v2772 = vsel %vm2748, %v2739, %v2257
        %v2774 = vsel %vm2748, %v2741, %v2259
        %v2776 = vsel %vm2748, %v2743, %v2261
        %v2778 = vsel %vm2748, %v2745, %v2263
        %v2780 = vsel %vm2748, %v2747, %v2265
        %vm2781 = vcmask 130048
        %v2783 = vsel %vm2781, %v2750, %v2315
        %v2785 = vsel %vm2781, %v2752, %v2317
        %v2787 = vsel %vm2781, %v2754, %v2319
        %v2789 = vsel %vm2781, %v2756, %v2321
        %v2791 = vsel %vm2781, %v2758, %v2323
        %v2793 = vsel %vm2781, %v2760, %v2325
        %v2795 = vsel %vm2781, %v2762, %v2327
        %v2797 = vsel %vm2781, %v2764, %v2329
        %v2799 = vsel %vm2781, %v2766, %v2331
        %v2801 = vsel %vm2781, %v2768, %v2333
        %v2803 = vsel %vm2781, %v2770, %v2335
        %v2805 = vsel %vm2781, %v2772, %v2337
        %v2807 = vsel %vm2781, %v2774, %v2339
        %v2809 = vsel %vm2781, %v2776, %v2341
        %v2811 = vsel %vm2781, %v2778, %v2343
        %v2813 = vsel %vm2781, %v2780, %v2345
        %vm2814 = vcmask 162816
        %v2816 = vsel %vm2814, %v2783, %v2395
        %v2818 = vsel %vm2814, %v2785, %v2397
        %v2820 = vsel %vm2814, %v2787, %v2399
        %v2822 = vsel %vm2814, %v2789, %v2401
        %v2824 = vsel %vm2814, %v2791, %v2403
        %v2826 = vsel %vm2814, %v2793, %v2405
        %v2828 = vsel %vm2814, %v2795, %v2407
        %v2830 = vsel %vm2814, %v2797, %v2409
        %v2832 = vsel %vm2814, %v2799, %v2411
        %v2834 = vsel %vm2814, %v2801, %v2413
        %v2836 = vsel %vm2814, %v2803, %v2415
        %v2838 = vsel %vm2814, %v2805, %v2417
        %v2840 = vsel %vm2814, %v2807, %v2419
        %v2842 = vsel %vm2814, %v2809, %v2421
        %v2844 = vsel %vm2814, %v2811, %v2423
        %v2846 = vsel %vm2814, %v2813, %v2425
        %vm2847 = vcmask 195584
        %v2849 = vsel %vm2847, %v2816, %v2475
        %v2851 = vsel %vm2847, %v2818, %v2477
        %v2853 = vsel %vm2847, %v2820, %v2479
        %v2855 = vsel %vm2847, %v2822, %v2481
        %v2857 = vsel %vm2847, %v2824, %v2483
        %v2859 = vsel %vm2847, %v2826, %v2485
        %v2861 = vsel %vm2847, %v2828, %v2487
        %v2863 = vsel %vm2847, %v2830, %v2489
        %v2865 = vsel %vm2847, %v2832, %v2491
        %v2867 = vsel %vm2847, %v2834, %v2493
        %v2869 = vsel %vm2847, %v2836, %v2495
        %v2871 = vsel %vm2847, %v2838, %v2497
        %v2873 = vsel %vm2847, %v2840, %v2499
        %v2875 = vsel %vm2847, %v2842, %v2501
        %v2877 = vsel %vm2847, %v2844, %v2503
        %v2879 = vsel %vm2847, %v2846, %v2505
        %vm2880 = vcmask 228352
        %v2882 = vsel %vm2880, %v2849, %v2555
        %v2884 = vsel %vm2880, %v2851, %v2557
        %v2886 = vsel %vm2880, %v2853, %v2559
        %v2888 = vsel %vm2880, %v2855, %v2561
        %v2890 = vsel %vm2880, %v2857, %v2563
        %v2892 = vsel %vm2880, %v2859, %v2565
        %v2894 = vsel %vm2880, %v2861, %v2567
        %v2896 = vsel %vm2880, %v2863, %v2569
        %v2898 = vsel %vm2880, %v2865, %v2571
        %v2900 = vsel %vm2880, %v2867, %v2573
        %v2902 = vsel %vm2880, %v2869, %v2575
        %v2904 = vsel %vm2880, %v2871, %v2577
        %v2906 = vsel %vm2880, %v2873, %v2579
        %v2908 = vsel %vm2880, %v2875, %v2581
        %v2910 = vsel %vm2880, %v2877, %v2583
        %v2912 = vsel %vm2880, %v2879, %v2585
        %vm2913 = vcmask 261120
        %v2915 = vsel %vm2913, %v2882, %v2635
        %v2917 = vsel %vm2913, %v2884, %v2637
        %v2919 = vsel %vm2913, %v2886, %v2639
        %v2921 = vsel %vm2913, %v2888, %v2641
        %v2923 = vsel %vm2913, %v2890, %v2643
        %v2925 = vsel %vm2913, %v2892, %v2645
        %v2927 = vsel %vm2913, %v2894, %v2647
        %v2929 = vsel %vm2913, %v2896, %v2649
        %v2931 = vsel %vm2913, %v2898, %v2651
        %v2933 = vsel %vm2913, %v2900, %v2653
        %v2935 = vsel %vm2913, %v2902, %v2655
        %v2937 = vsel %vm2913, %v2904, %v2657
        %v2939 = vsel %vm2913, %v2906, %v2659
        %v2941 = vsel %vm2913, %v2908, %v2661
        %v2943 = vsel %vm2913, %v2910, %v2663
        %v2945 = vsel %vm2913, %v2912, %v2665
        %v2946 = vld [vmem:[%s1] sm:$0xf]
        %v2947 = vld [vmem:[%s1 + $0x4] sm:$0xf]
        %v2948 = vld [vmem:[%s1 + $0x8] sm:$0xf]
        %v2949 = vld [vmem:[%s1 + $0xc] sm:$0xf]
        %v2950 = vld [vmem:[%s1 + $0x10] sm:$0x3]
        %v2951 = vld [vmem:[%s2] sm:$0x1]
        %v2953 = vlaneseq
        %v2954 = vshrl.u32 %v2953, 7
        %v2955 = vsub.s32 0, %v2954
        %v2956 = vrot.slane %v2951, %v2955
        %v2963 = vunpack.c.l.b16 %v2946
        %v2964 = vunpack.c.l.b16 %v2947
        %v2965 = vunpack.c.l.b16 %v2948
        %v2966 = vunpack.c.l.b16 %v2949
        %v2967 = vunpack.c.l.b16 %v2950
        %v2968 = vpack.c.b16 %v2964, %v2963
        %v2969 = vpack.c.b16 %v2966, %v2965
        %v2970 = vpack.c.b16 %v2967, %v2967
        %vm2973 = vcmask 293888
        %v2974 = vsel %vm2973, %v2915, 0
        %v2976 = vsel %vm2973, %v2917, 0
        %v2978 = vsel %vm2973, %v2919, 0
        %v2980 = vsel %vm2973, %v2921, 0
        %v2982 = vsel %vm2973, %v2923, 0
        %v2984 = vsel %vm2973, %v2925, 0
        %v2986 = vsel %vm2973, %v2927, 0
        %v2988 = vsel %vm2973, %v2929, 0
        %v2990 = vsel %vm2973, %v2931, 0
        %v2992 = vsel %vm2973, %v2933, 0
        %v2994 = vsel %vm2973, %v2935, 0
        %v2996 = vsel %vm2973, %v2937, 0
        %v2998 = vsel %vm2973, %v2939, 0
        %v3000 = vsel %vm2973, %v2941, 0
        %v3002 = vsel %vm2973, %v2943, 0
        %v3004 = vsel %vm2973, %v2945, 0
        %vm3006 = vcmask 1041408
        %v3008 = vsel %vm3006, %v2970, 0
        %3010 = vmatprep.subr.bf16.mxu0 0
        %3011 = vmatpush1.bf16.msra.mxu0 %v2968
        %3012 = vmatprep.subr.bf16.mxu0 0
        %3013 = vmatpush1.bf16.msra.mxu0 %v2969
        %3014 = vmatprep.subr.bf16.mxu0 0
        %3015 = vmatpush1.bf16.msra.mxu0 %v3008
        %3016 = vmatprep.subr.bf16.mxu0 0
        %3017 = vmatpush1.bf16.msra.mxu0 0
        %3018 = vmatprep.subr.bf16.mxu0 0
        %3019 = vmatpush1.bf16.msra.mxu0 0
        %3020 = vmatprep.subr.bf16.mxu0 0
        %3021 = vmatpush1.bf16.msra.mxu0 0
        %3022 = vmatprep.subr.bf16.mxu0 0
        %3023 = vmatpush1.bf16.msra.mxu0 0
        %3024 = vmatprep.subr.bf16.mxu0 0
        %3025 = vmatpush1.bf16.msra.mxu0 0
        %3026 = vmatprep.subr.bf16.mxu0 0
        %3027 = vmatpush1.bf16.msra.mxu0 0
        %3028 = vmatprep.subr.bf16.mxu0 0
        %3029 = vmatpush1.bf16.msra.mxu0 0
        %3030 = vmatprep.subr.bf16.mxu0 0
        %3031 = vmatpush1.bf16.msra.mxu0 0
        %3032 = vmatprep.subr.bf16.mxu0 0
        %3033 = vmatpush1.bf16.msra.mxu0 0
        %3034 = vmatprep.subr.bf16.mxu0 0
        %3035 = vmatpush1.bf16.msra.mxu0 0
        %3036 = vmatprep.subr.bf16.mxu0 0
        %3037 = vmatpush1.bf16.msra.mxu0 0
        %3038 = vmatprep.subr.bf16.mxu0 0
        %3039 = vmatpush1.bf16.msra.mxu0 0
        %3040 = vmatprep.subr.bf16.mxu0 0
        %3041 = vmatpush1.bf16.msra.mxu0 0
        %3042 = vmatprep.mubr.bf16.mxu0 0
        %3043 = vmatmul.mubr.bf16.gmra.mrb[0].mxu0 %v2974
        %v3044 = vpop.f32.mrb[0].mxu0
        %v3045 = vadd.f32 %v2956, %v3044
        %v3046 = vpop.f32.mrb[0].mxu0
        %v3047 = vpop.f32.mrb[0].mxu0
        %v3048 = vadd.f32 %v2956, %v3047
        %v3049 = vpop.f32.mrb[0].mxu0
        %3050 = vmatprep.mubr.bf16.mxu0 0
        %3051 = vmatmul.mubr.bf16.gmra.mrb[0].mxu0 %v2976
        %v3052 = vpop.f32.mrb[0].mxu0
        %v3053 = vadd.f32 %v2956, %v3052
        %v3054 = vpop.f32.mrb[0].mxu0
        %v3055 = vpop.f32.mrb[0].mxu0
        %v3056 = vadd.f32 %v2956, %v3055
        %v3057 = vpop.f32.mrb[0].mxu0
        %3058 = vmatprep.mubr.bf16.mxu0 0
        %3059 = vmatmul.mubr.bf16.gmra.mrb[0].mxu0 %v2978
        %v3060 = vpop.f32.mrb[0].mxu0
        %v3061 = vadd.f32 %v2956, %v3060
        %v3062 = vpop.f32.mrb[0].mxu0
        %v3063 = vpop.f32.mrb[0].mxu0
        %v3064 = vadd.f32 %v2956, %v3063
        %v3065 = vpop.f32.mrb[0].mxu0
        %3066 = vmatprep.mubr.bf16.mxu0 0
        %3067 = vmatmul.mubr.bf16.gmra.mrb[0].mxu0 %v2980
        %v3068 = vpop.f32.mrb[0].mxu0
        %v3069 = vadd.f32 %v2956, %v3068
        %v3070 = vpop.f32.mrb[0].mxu0
        %v3071 = vpop.f32.mrb[0].mxu0
        %v3072 = vadd.f32 %v2956, %v3071
        %v3073 = vpop.f32.mrb[0].mxu0
        %3074 = vmatprep.mubr.bf16.mxu0 0
        %3075 = vmatmul.mubr.bf16.gmra.mrb[0].mxu0 %v2982
        %v3076 = vpop.f32.mrb[0].mxu0
        %v3077 = vadd.f32 %v2956, %v3076
        %v3078 = vpop.f32.mrb[0].mxu0
        %v3079 = vpop.f32.mrb[0].mxu0
        %v3080 = vadd.f32 %v2956, %v3079
        %v3081 = vpop.f32.mrb[0].mxu0
        %3082 = vmatprep.mubr.bf16.mxu0 0
        %3083 = vmatmul.mubr.bf16.gmra.mrb[0].mxu0 %v2984
        %v3084 = vpop.f32.mrb[0].mxu0
        %v3085 = vadd.f32 %v2956, %v3084
        %v3086 = vpop.f32.mrb[0].mxu0
        %v3087 = vpop.f32.mrb[0].mxu0
        %v3088 = vadd.f32 %v2956, %v3087
        %v3089 = vpop.f32.mrb[0].mxu0
        %3090 = vmatprep.mubr.bf16.mxu0 0
        %3091 = vmatmul.mubr.bf16.gmra.mrb[0].mxu0 %v2986
        %v3092 = vpop.f32.mrb[0].mxu0
        %v3093 = vadd.f32 %v2956, %v3092
        %v3094 = vpop.f32.mrb[0].mxu0
        %v3095 = vpop.f32.mrb[0].mxu0
        %v3096 = vadd.f32 %v2956, %v3095
        %v3097 = vpop.f32.mrb[0].mxu0
        %3098 = vmatprep.mubr.bf16.mxu0 0
        %3099 = vmatmul.mubr.bf16.gmra.mrb[0].mxu0 %v2988
        %v3100 = vpop.f32.mrb[0].mxu0
        %v3101 = vadd.f32 %v2956, %v3100
        %v3102 = vpop.f32.mrb[0].mxu0
        %v3103 = vpop.f32.mrb[0].mxu0
        %v3104 = vadd.f32 %v2956, %v3103
        %v3105 = vpop.f32.mrb[0].mxu0
        %3106 = vmatprep.mubr.bf16.mxu0 0
        %3107 = vmatmul.mubr.bf16.gmra.mrb[0].mxu0 %v2990
        %v3108 = vpop.f32.mrb[0].mxu0
        %v3109 = vadd.f32 %v2956, %v3108
        %v3110 = vpop.f32.mrb[0].mxu0
        %v3111 = vpop.f32.mrb[0].mxu0
        %v3112 = vadd.f32 %v2956, %v3111
        %v3113 = vpop.f32.mrb[0].mxu0
        %3114 = vmatprep.mubr.bf16.mxu0 0
        %3115 = vmatmul.mubr.bf16.gmra.mrb[0].mxu0 %v2992
        %v3116 = vpop.f32.mrb[0].mxu0
        %v3117 = vadd.f32 %v2956, %v3116
        %v3118 = vpop.f32.mrb[0].mxu0
        %v3119 = vpop.f32.mrb[0].mxu0
        %v3120 = vadd.f32 %v2956, %v3119
        %v3121 = vpop.f32.mrb[0].mxu0
        %3122 = vmatprep.mubr.bf16.mxu0 0
        %3123 = vmatmul.mubr.bf16.gmra.mrb[0].mxu0 %v2994
        %v3124 = vpop.f32.mrb[0].mxu0
        %v3125 = vadd.f32 %v2956, %v3124
        %v3126 = vpop.f32.mrb[0].mxu0
        %v3127 = vpop.f32.mrb[0].mxu0
        %v3128 = vadd.f32 %v2956, %v3127
        %v3129 = vpop.f32.mrb[0].mxu0
        %3130 = vmatprep.mubr.bf16.mxu0 0
        %3131 = vmatmul.mubr.bf16.gmra.mrb[0].mxu0 %v2996
        %v3132 = vpop.f32.mrb[0].mxu0
        %v3133 = vadd.f32 %v2956, %v3132
        %v3134 = vpop.f32.mrb[0].mxu0
        %v3135 = vpop.f32.mrb[0].mxu0
        %v3136 = vadd.f32 %v2956, %v3135
        %v3137 = vpop.f32.mrb[0].mxu0
        %3138 = vmatprep.mubr.bf16.mxu0 0
        %3139 = vmatmul.mubr.bf16.gmra.mrb[0].mxu0 %v2998
        %v3140 = vpop.f32.mrb[0].mxu0
        %v3141 = vadd.f32 %v2956, %v3140
        %v3142 = vpop.f32.mrb[0].mxu0
        %v3143 = vpop.f32.mrb[0].mxu0
        %v3144 = vadd.f32 %v2956, %v3143
        %v3145 = vpop.f32.mrb[0].mxu0
        %3146 = vmatprep.mubr.bf16.mxu0 0
        %3147 = vmatmul.mubr.bf16.gmra.mrb[0].mxu0 %v3000
        %v3148 = vpop.f32.mrb[0].mxu0
        %v3149 = vadd.f32 %v2956, %v3148
        %v3150 = vpop.f32.mrb[0].mxu0
        %v3151 = vpop.f32.mrb[0].mxu0
        %v3152 = vadd.f32 %v2956, %v3151
        %v3153 = vpop.f32.mrb[0].mxu0
        %3154 = vmatprep.mubr.bf16.mxu0 0
        %3155 = vmatmul.mubr.bf16.gmra.mrb[0].mxu0 %v3002
        %v3156 = vpop.f32.mrb[0].mxu0
        %v3157 = vadd.f32 %v2956, %v3156
        %v3158 = vpop.f32.mrb[0].mxu0
        %v3159 = vpop.f32.mrb[0].mxu0
        %v3160 = vadd.f32 %v2956, %v3159
        %v3161 = vpop.f32.mrb[0].mxu0
        %3162 = vmatprep.mubr.bf16.mxu0 0
        %3163 = vmatmul.mubr.bf16.gmra.mrb[0].mxu0 %v3004
        %v3164 = vpop.f32.mrb[0].mxu0
        %v3165 = vadd.f32 %v2956, %v3164
        %v3166 = vpop.f32.mrb[0].mxu0
        %v3167 = vpop.f32.mrb[0].mxu0
        %v3168 = vadd.f32 %v2956, %v3167
        %v3169 = vpop.f32.mrb[0].mxu0
        %3170 = vdwg.mxu0
        %v3171 = vmax.f32 %v3045, 0.0
        %v3172 = vmax.f32 %v3048, 0.0
        %v3173 = vmax.f32 %v3053, 0.0
        %v3174 = vmax.f32 %v3056, 0.0
        %v3175 = vmax.f32 %v3061, 0.0
        %v3176 = vmax.f32 %v3064, 0.0
        %v3177 = vmax.f32 %v3069, 0.0
        %v3178 = vmax.f32 %v3072, 0.0
        %v3179 = vmax.f32 %v3077, 0.0
        %v3180 = vmax.f32 %v3080, 0.0
        %v3181 = vmax.f32 %v3085, 0.0
        %v3182 = vmax.f32 %v3088, 0.0
        %v3183 = vmax.f32 %v3093, 0.0
        %v3184 = vmax.f32 %v3096, 0.0
        %v3185 = vmax.f32 %v3101, 0.0
        %v3186 = vmax.f32 %v3104, 0.0
        %v3187 = vmax.f32 %v3109, 0.0
        %v3188 = vmax.f32 %v3112, 0.0
        %v3189 = vmax.f32 %v3117, 0.0
        %v3190 = vmax.f32 %v3120, 0.0
        %v3191 = vmax.f32 %v3125, 0.0
        %v3192 = vmax.f32 %v3128, 0.0
        %v3193 = vmax.f32 %v3133, 0.0
        %v3194 = vmax.f32 %v3136, 0.0
        %v3195 = vmax.f32 %v3141, 0.0
        %v3196 = vmax.f32 %v3144, 0.0
        %v3197 = vmax.f32 %v3149, 0.0
        %v3198 = vmax.f32 %v3152, 0.0
        %v3199 = vmax.f32 %v3157, 0.0
        %v3200 = vmax.f32 %v3160, 0.0
        %v3201 = vmax.f32 %v3165, 0.0
        %v3202 = vmax.f32 %v3168, 0.0
        %v3203 = vpack.c.bf16 %v3172, %v3171
        %v3204 = vpack.c.bf16 %v3174, %v3173
        %v3205 = vpack.c.bf16 %v3176, %v3175
        %v3206 = vpack.c.bf16 %v3178, %v3177
        %v3207 = vpack.c.bf16 %v3180, %v3179
        %v3208 = vpack.c.bf16 %v3182, %v3181
        %v3209 = vpack.c.bf16 %v3184, %v3183
        %v3210 = vpack.c.bf16 %v3186, %v3185
        %v3211 = vpack.c.bf16 %v3188, %v3187
        %v3212 = vpack.c.bf16 %v3190, %v3189
        %v3213 = vpack.c.bf16 %v3192, %v3191
        %v3214 = vpack.c.bf16 %v3194, %v3193
        %v3215 = vpack.c.bf16 %v3196, %v3195
        %v3216 = vpack.c.bf16 %v3198, %v3197
        %v3217 = vpack.c.bf16 %v3200, %v3199
        %v3218 = vpack.c.bf16 %v3202, %v3201
        %v3235 = vunpack.c.l.b16 %v3203
        %v3236 = vunpack.c.h.b16 %v3203
        %v3237 = vunpack.c.l.b16 %v3204
        %v3238 = vunpack.c.h.b16 %v3204
        %v3239 = vunpack.c.l.b16 %v3205
        %v3240 = vunpack.c.h.b16 %v3205
        %v3241 = vunpack.c.l.b16 %v3206
        %v3242 = vunpack.c.h.b16 %v3206
        %v3243 = vunpack.c.l.b16 %v3207
        %v3244 = vunpack.c.h.b16 %v3207
        %v3245 = vunpack.c.l.b16 %v3208
        %v3246 = vunpack.c.h.b16 %v3208
        %v3247 = vunpack.c.l.b16 %v3209
        %v3248 = vunpack.c.h.b16 %v3209
        %v3249 = vunpack.c.l.b16 %v3210
        %v3250 = vunpack.c.h.b16 %v3210
        %v3251 = vunpack.c.l.b16 %v3211
        %v3252 = vunpack.c.h.b16 %v3211
        %v3253 = vunpack.c.l.b16 %v3212
        %v3254 = vunpack.c.h.b16 %v3212
        %v3255 = vunpack.c.l.b16 %v3213
        %v3256 = vunpack.c.h.b16 %v3213
        %v3257 = vunpack.c.l.b16 %v3214
        %v3258 = vunpack.c.h.b16 %v3214
        %v3259 = vunpack.c.l.b16 %v3215
        %v3260 = vunpack.c.h.b16 %v3215
        %v3261 = vunpack.c.l.b16 %v3216
        %v3262 = vunpack.c.h.b16 %v3216
        %v3263 = vunpack.c.l.b16 %v3217
        %v3264 = vunpack.c.h.b16 %v3217
        %v3265 = vunpack.c.l.b16 %v3218
        %v3266 = vunpack.c.h.b16 %v3218
        %v3267 = vpack.c.b16 %v3235, %v3235
        %v3268 = vpack.c.b16 %v3236, %v3236
        %v3269 = vpack.c.b16 %v3237, %v3237
        %v3270 = vpack.c.b16 %v3238, %v3238
        %v3271 = vpack.c.b16 %v3239, %v3239
        %v3272 = vpack.c.b16 %v3240, %v3240
        %v3273 = vpack.c.b16 %v3241, %v3241
        %v3274 = vpack.c.b16 %v3242, %v3242
        %v3275 = vpack.c.b16 %v3243, %v3243
        %v3276 = vpack.c.b16 %v3244, %v3244
        %v3277 = vpack.c.b16 %v3245, %v3245
        %v3278 = vpack.c.b16 %v3246, %v3246
        %v3279 = vpack.c.b16 %v3247, %v3247
        %v3280 = vpack.c.b16 %v3248, %v3248
        %v3281 = vpack.c.b16 %v3249, %v3249
        %v3282 = vpack.c.b16 %v3250, %v3250
        %v3283 = vpack.c.b16 %v3251, %v3251
        %v3284 = vpack.c.b16 %v3252, %v3252
        %v3285 = vpack.c.b16 %v3253, %v3253
        %v3286 = vpack.c.b16 %v3254, %v3254
        %v3287 = vpack.c.b16 %v3255, %v3255
        %v3288 = vpack.c.b16 %v3256, %v3256
        %v3289 = vpack.c.b16 %v3257, %v3257
        %v3290 = vpack.c.b16 %v3258, %v3258
        %v3291 = vpack.c.b16 %v3259, %v3259
        %v3292 = vpack.c.b16 %v3260, %v3260
        %v3293 = vpack.c.b16 %v3261, %v3261
        %v3294 = vpack.c.b16 %v3262, %v3262
        %v3295 = vpack.c.b16 %v3263, %v3263
        %v3296 = vpack.c.b16 %v3264, %v3264
        %v3297 = vpack.c.b16 %v3265, %v3265
        %v3298 = vpack.c.b16 %v3266, %v3266
        %3331 = vst [vmem:[%s177] sm:$0xf] %v3267
        %3332 = vst [vmem:[%s177 + $0x4] sm:$0xf] %v3268
        %3333 = vst [vmem:[%s177 + $0x8] sm:$0xf] %v3269
        %3334 = vst [vmem:[%s177 + $0xc] sm:$0xf] %v3270
        %3335 = vst [vmem:[%s177 + $0x10] sm:$0xf] %v3271
        %3336 = vst [vmem:[%s177 + $0x14] sm:$0xf] %v3272
        %3337 = vst [vmem:[%s177 + $0x18] sm:$0xf] %v3273
        %3338 = vst [vmem:[%s177 + $0x1c] sm:$0xf] %v3274
        %3339 = vst [vmem:[%s177 + $0x20] sm:$0xf] %v3275
        %3340 = vst [vmem:[%s177 + $0x24] sm:$0xf] %v3276
        %3341 = vst [vmem:[%s177 + $0x28] sm:$0xf] %v3277
        %3342 = vst [vmem:[%s177 + $0x2c] sm:$0xf] %v3278
        %3343 = vst [vmem:[%s177 + $0x30] sm:$0xf] %v3279
        %3344 = vst [vmem:[%s177 + $0x34] sm:$0xf] %v3280
        %3345 = vst [vmem:[%s177 + $0x38] sm:$0xf] %v3281
        %3346 = vst [vmem:[%s177 + $0x3c] sm:$0xf] %v3282
        %3347 = vst [vmem:[%s177 + $0x40] sm:$0xf] %v3283
        %3348 = vst [vmem:[%s177 + $0x44] sm:$0xf] %v3284
        %3349 = vst [vmem:[%s177 + $0x48] sm:$0xf] %v3285
        %3350 = vst [vmem:[%s177 + $0x4c] sm:$0xf] %v3286
        %3351 = vst [vmem:[%s177 + $0x50] sm:$0xf] %v3287
        %3352 = vst [vmem:[%s177 + $0x54] sm:$0xf] %v3288
        %3353 = vst [vmem:[%s177 + $0x58] sm:$0xf] %v3289
        %3354 = vst [vmem:[%s177 + $0x5c] sm:$0xf] %v3290
        %3355 = vst [vmem:[%s177 + $0x60] sm:$0xf] %v3291
        %3356 = vst [vmem:[%s177 + $0x64] sm:$0xf] %v3292
        %3357 = vst [vmem:[%s177 + $0x68] sm:$0xf] %v3293
        %3358 = vst [vmem:[%s177 + $0x6c] sm:$0xf] %v3294
        %3359 = vst [vmem:[%s177 + $0x70] sm:$0xf] %v3295
        %3360 = vst [vmem:[%s177 + $0x74] sm:$0xf] %v3296
        %3361 = vst [vmem:[%s177 + $0x78] sm:$0xf] %v3297
        %3362 = vst [vmem:[%s177 + $0x7c] sm:$0xf] %v3298
        %s3363 = sand.u32 %s107, 1
        %s3364 = scalar_lea.sflag [#allocation3], %s3363
        %s3365 = sand.u32 %s107, 1
        %s3366 = smul.addr %s3365, 128
        %s3367 = scalar_lea.vmem [#allocation2], %s3366
        // Predicated region
        $region33: #{tpu_custom_call.1} parent=31 // pred_check
          %p3368 = pneg %p117
        $region34: #{tpu_custom_call.1} parent=31 // pred_check_branch
          %3370 = sbr.rel (%p3368) target = $region36
        $region35: #{tpu_custom_call.1} parent=31 // pred_region
          %s3372 = ssub.s32 2048, 2048
          %3373 = vsyncadd %s3364, %s3372
          %s3374 = smul.addr %s22, 32
          %s3375 = smul.addr %s21, 32
          %s3376 = sadd.s32 %s3374, %s3375
          %s3377 = smul.addr %s3376, 64
          %s3378 = scalar_lea.hbm %s3, %s3377
          %s3379 = sshll.u32 %s3367, 4
          %s3380 = int_to_ptr.vmem [resolvable:$true] %s3379
          %3385 = dma.vmem_to_hbm [thread:$0]  %s3380, 2048, %s3378, %s3364, 64, 64, 4
        $region36: #{tpu_custom_call.1} parent=31 // pred_fallthru
          _
      $region32: #{tpu_custom_call.1} parent=5 // pred_fallthru
        _
      %p3386 = scmp.le.s32.totalorder 2, %s12
      // Predicated region
      $region37: #{tpu_custom_call.1} parent=5 // pred_check
        %p3387 = pneg %p3386
      $region38: #{tpu_custom_call.1} parent=5 // pred_check_branch
        %3389 = sbr.rel (%p3387) target = $region40
      $region39: #{tpu_custom_call.1} parent=5 // pred_region
        %s3390 = ssub.s32 %s12, 2
        // Predicated region
        $region41: #{tpu_custom_call.1} parent=39 // pred_check
          %p3391 = pneg %p123
        $region42: #{tpu_custom_call.1} parent=39 // pred_check_branch
          %3393 = sbr.rel (%p3391) target = $region44
        $region43: #{tpu_custom_call.1} parent=39 // pred_region
          %s3394 = sand.u32 %s108, 1
          %s3395 = scalar_lea.sflag [#allocation3], %s3394
          %s3396 = sand.u32 %s108, 1
          %s3397 = smul.addr %s3396, 128
          %s3398 = scalar_lea.vmem [#allocation2], %s3397
          %3399 = dma.done %s3395, 2048
        $region44: #{tpu_custom_call.1} parent=39 // pred_fallthru
          _
      $region40: #{tpu_custom_call.1} parent=5 // pred_fallthru
        _
    $region6: #{tpu_custom_call.1} parent=1 // loop_footer
      %s16 = sadd.s32 1, %s12
    $region7: #{tpu_custom_call.1} parent=1 // loop_footer_branch
      %11 = sbr.rel target = $region3
    $region8: #{tpu_custom_call.1} parent=1 // loop_exit
      _
    %3400 = vsyncpa [#allocation3], 1
    %s3401 = scalar_lea.sflag [#allocation3], 1
    %3402 = vsyncpa %s3401, 1

</llo_original>
